<compile_context>
chip_gen: v7x
topology: tpu7x:2x2x1
jax: 0.10.0
libtpu: 0.0.40
codegen_flags: <defaults>
</compile_context>

<pallas_src>
import math
import functools

import jax
import jax.numpy as jnp
import numpy as np
from jax import lax
from jax.experimental import pallas as pl
from jax.experimental.pallas import tpu as pltpu


def _encoder_layer_kernel(x_ref, mask_ref, wqkv_ref, bqkv_ref, wo_ref, vecs_ref,
                          w1_ref, b1_ref, w2_ref,
                          out_ref, attn_ref,
                          q_scr, k_scr, v_scr, ctx_scr, ctx2_scr,
                          *, n_heads, d_k, d_v, d_model, seq, block_b):
    S = seq
    H = n_heads
    Hdk = H * d_k
    Hdv = H * d_v
    R = block_b * S
    f32 = jnp.float32
    bf16 = jnp.bfloat16

    # ---- fused QKV projection: one (R, d_model) @ (d_model, 2*H*d_k + H*d_v) matmul ----
    x = x_ref[...]                                   # (block_b, S, d_model) f32
    xr = x.reshape(R, d_model)                       # rows = batch * seq (free major reshape)
    qkv = jnp.dot(xr.astype(bf16), wqkv_ref[...],
                  preferred_element_type=f32) + bqkv_ref[...]

    scale = f32(1.0 / math.sqrt(d_k))

    # ---- stage per-head Q/K/V (bf16) with the head on a LEADING scratch axis so the
    #      attention loop below can index heads dynamically (leading-dim ref indexing
    #      is pure address arithmetic; no per-head lane relayouts, no K/V transposes).
    for h in range(H):
        q_scr[h] = (qkv[:, h * d_k:(h + 1) * d_k] * scale).astype(bf16).reshape(block_b, S, d_k)
        k_scr[h] = qkv[:, Hdk + h * d_k:Hdk + (h + 1) * d_k].astype(bf16).reshape(block_b, S, d_k)
        v_scr[h] = qkv[:, 2 * Hdk + h * d_v:2 * Hdk + (h + 1) * d_v].astype(bf16).reshape(block_b, S, d_v)

    # ---- attention: rolled loop over heads (bounded live ranges, one hot body) ----
    for b in range(block_b):                         # block_b is small; heads are rolled
        masked = mask_ref[b] != 0                    # (S, S) bool, head-invariant

        @pl.loop(0, H)
        def _head(h, b=b, masked=masked):
            qh = q_scr[h, b]                         # (S, d_k) bf16
            kh = k_scr[h, b]                         # (S, d_k) bf16
            vh = v_scr[h, b]                         # (S, d_v) bf16

            # scores = (q / sqrt(d_k)) @ k^T  -- NT contraction, f32 accumulation
            scores = lax.dot_general(qh, kh, (((1,), (1,)), ((), ())),
                                     preferred_element_type=f32)
            # replace semantics (matches masked_fill_): fully-masked rows -> uniform softmax
            scores = jnp.where(masked, f32(-1e9), scores)
            scores = scores - jnp.max(scores, axis=-1, keepdims=True)
            e = jnp.exp(scores)
            attn = e * pl.reciprocal(jnp.sum(e, axis=-1, keepdims=True), approx=True)
            attn_ref[b, h] = attn.astype(attn_ref.dtype)          # bf16 HBM write

            # context = attn @ v  -- NN contraction
            ctx = lax.dot_general(attn.astype(bf16), vh, (((1,), (0,)), ((), ())),
                                  preferred_element_type=f32)      # (S, d_v)
            ctx_scr[h, b] = ctx.astype(bf16)

    # ---- repack (H, block_b, S, d_v) -> (R, H*d_v) so W_O is one fat matmul ----
    for h in range(H):
        ctx2_scr[:, h * d_v:(h + 1) * d_v] = ctx_scr[h].reshape(R, d_v)

    bo = vecs_ref[0:1, :]
    gamma = vecs_ref[1:2, :]
    beta = vecs_ref[2:3, :]
    b2 = vecs_ref[3:4, :]

    # ---- single fused output projection over all heads (contraction = H*d_v) ----
    proj = jnp.dot(ctx2_scr[...], wo_ref[...], preferred_element_type=f32) + bo

    # ---- residual + LayerNorm (population variance, eps = 1e-5, f32) ----
    y = proj + xr
    mean = jnp.mean(y, axis=-1, keepdims=True)
    cent = y - mean
    var = jnp.mean(cent * cent, axis=-1, keepdims=True)
    y_ln = cent * lax.rsqrt(var + f32(1e-5)) * gamma + beta

    # ---- position-wise FFN with exact (erf-based) GELU ----
    h1 = jnp.dot(y_ln.astype(bf16), w1_ref[...], preferred_element_type=f32) + b1_ref[...]
    g = h1 * 0.5 * (1.0 + lax.erf(h1 * f32(1.0 / math.sqrt(2.0))))
    ff = jnp.dot(g.astype(bf16), w2_ref[...], preferred_element_type=f32) + b2

    out_ref[...] = ff.reshape(block_b, S, d_model).astype(out_ref.dtype)


def _pick_block_b(B, S, target_rows=512):
    """Largest divisor of B with block_b*S <= ~target rows and >= 2 grid steps
    (so v7x's two TensorCores both get work via the 'parallel' grid axis)."""
    best = 1
    for cand in range(1, B + 1):
        if B % cand:
            continue
        steps = B // cand
        if B >= 2 and steps < 2:
            continue
        if cand * S > max(target_rows, S):
            continue
        best = max(best, cand)
    return best


def _round128(n):
    return -(-n // 128) * 128


def _vmem_bytes_estimate(block_b, S, d_model, d_ff, H, d_k, d_v, qkv_w):
    R = block_b * S
    weights = 2 * (d_model * qkv_w + H * d_v * d_model + d_model * d_ff + d_ff * d_model)  # bf16, Buffered(1)
    biases = 4 * (qkv_w + d_ff + 4 * d_model)
    io = 2 * 2 * 4 * R * d_model                        # x + out tiles, f32, double-buffered
    io += 2 * block_b * S * _round128(S)                # mask (int8), double-buffered
    io += 2 * 2 * block_b * H * S * _round128(S)        # attn out (bf16), double-buffered
    scratch = 2 * H * R * (2 * _round128(d_k) + 2 * _round128(d_v)) + 2 * R * _round128(H * d_v)
    interm = 4 * R * (qkv_w + 2 * d_ff + 3 * d_model)   # rough f32 temporaries (qkv, h1, g, y)
    return weights + biases + io + scratch + interm


def encoder_layer(x, mask, params, *, n_heads, d_k, d_v, block_b=None,
                  attn_dtype=jnp.bfloat16):
    """x: (B, S, d_model) f32; mask: (B, S, S) int (nonzero == masked)."""
    B, S, d_model = x.shape
    d_ff = params["w1"].shape[1]
    Hdk, Hdv = n_heads * d_k, n_heads * d_v
    qkv_w = 2 * Hdk + Hdv
    bf16, f32 = jnp.bfloat16, jnp.float32

    if block_b is None:
        block_b = _pick_block_b(B, S)
    assert B % block_b == 0
    n_steps = B // block_b

    # host-side operand packing / bf16 weight casts / int8 mask
    wqkv = jnp.concatenate([params["wq"], params["wk"], params["wv"]], axis=1).astype(bf16)
    bqkv = jnp.concatenate([params["bq"], params["bk"], params["bv"]], axis=1).astype(f32)
    wo = params["wo"].astype(bf16)
    w1 = params["w1"].astype(bf16)
    w2 = params["w2"].astype(bf16)
    b1 = params["b1"].astype(f32)
    vecs = jnp.concatenate([params["bo"], params["ln_g"], params["ln_b"], params["b2"]],
                           axis=0).astype(f32)                      # (4, d_model)
    mask_i8 = mask.astype(jnp.int8)

    kernel = functools.partial(_encoder_layer_kernel, n_heads=n_heads, d_k=d_k, d_v=d_v,
                               d_model=d_model, seq=S, block_b=block_b)

    def const(shape):
        n = len(shape)
        # constant index map -> single-buffer (weights stay resident, no re-DMA)
        return pl.BlockSpec(shape, lambda b: (0,) * n, pipeline_mode=pl.Buffered(1))

    flops = int(2 * B * S * d_model * qkv_w
                + 2 * B * n_heads * S * S * (d_k + d_v)
                + 2 * B * S * Hdv * d_model
                + 4 * B * S * d_model * d_ff)
    transcendentals = int(B * n_heads * S * S + B * S * d_ff)
    bytes_accessed = int(4 * B * S * d_model * 2                     # x in + out (f32)
                         + B * S * S                                 # mask (int8)
                         + 2 * B * n_heads * S * S                   # attn (bf16)
                         + 2 * (wqkv.size + wo.size + w1.size + w2.size)
                         + 4 * (bqkv.size + vecs.size + b1.size))

    # VMEM budget: estimate + headroom, capped at 64 MiB so it is v7x-safe.
    # On v6e (128 MiB) raise toward ~96 MiB and a larger block_b for fatter MXU M.
    vmem_limit = int(min(max(_vmem_bytes_estimate(block_b, S, d_model, d_ff,
                                                  n_heads, d_k, d_v, qkv_w) + (8 << 20),
                             32 << 20),
                         64 << 20))

    out, attn = pl.pallas_call(
        kernel,
        out_shape=(
            jax.ShapeDtypeStruct((B, S, d_model), jnp.float32),
            jax.ShapeDtypeStruct((B, n_heads, S, S), attn_dtype),
        ),
        grid_spec=pltpu.PrefetchScalarGridSpec(
            num_scalar_prefetch=0,
            grid=(n_steps,),
            in_specs=[
                pl.BlockSpec((block_b, S, d_model), lambda b: (b, 0, 0)),   # x
                pl.BlockSpec((block_b, S, S), lambda b: (b, 0, 0)),         # mask (int8)
                const((d_model, qkv_w)),                                    # W_QKV (bf16)
                const((1, qkv_w)),                                          # b_QKV
                const((Hdv, d_model)),                                      # W_O (bf16)
                const((4, d_model)),                                        # [b_O; gamma; beta; b_2]
                const((d_model, d_ff)),                                     # W_1 (bf16)
                const((1, d_ff)),                                           # b_1
                const((d_ff, d_model)),                                     # W_2 (bf16)
            ],
            out_specs=[
                pl.BlockSpec((block_b, S, d_model), lambda b: (b, 0, 0)),
                pl.BlockSpec((block_b, n_heads, S, S), lambda b: (b, 0, 0, 0)),
            ],
            scratch_shapes=[
                pltpu.VMEM((n_heads, block_b, S, d_k), jnp.bfloat16),       # per-head Q (scaled)
                pltpu.VMEM((n_heads, block_b, S, d_k), jnp.bfloat16),       # per-head K
                pltpu.VMEM((n_heads, block_b, S, d_v), jnp.bfloat16),       # per-head V
                pltpu.VMEM((n_heads, block_b, S, d_v), jnp.bfloat16),       # per-head context
                pltpu.VMEM((block_b * S, Hdv), jnp.bfloat16),               # repacked context
            ],
        ),
        compiler_params=pltpu.CompilerParams(
            dimension_semantics=("parallel",),
            vmem_limit_bytes=vmem_limit,
        ),
        cost_estimate=pl.CostEstimate(flops=flops, transcendentals=transcendentals,
                                      bytes_accessed=bytes_accessed),
    )(x, mask_i8, wqkv, bqkv, wo, vecs, w1, b1, w2)
    return out, attn


def reference_encoder_layer(x, mask, params, *, n_heads, d_k, d_v):
    """Pure-JAX f32 reference mirroring the PyTorch forward semantics."""
    B, S, d_model = x.shape
    q = (x @ params["wq"] + params["bq"]).reshape(B, S, n_heads, d_k).transpose(0, 2, 1, 3)
    k = (x @ params["wk"] + params["bk"]).reshape(B, S, n_heads, d_k).transpose(0, 2, 1, 3)
    v = (x @ params["wv"] + params["bv"]).reshape(B, S, n_heads, d_v).transpose(0, 2, 1, 3)
    scores = jnp.einsum("bhqd,bhkd->bhqk", q, k) / np.sqrt(d_k)
    scores = jnp.where(mask[:, None, :, :] != 0, -1e9, scores)
    attn = jax.nn.softmax(scores, axis=-1)
    ctx = jnp.einsum("bhqk,bhkd->bhqd", attn, v)
    ctx = ctx.transpose(0, 2, 1, 3).reshape(B, S, n_heads * d_v)
    out = ctx @ params["wo"] + params["bo"]
    y = out + x
    mean = jnp.mean(y, axis=-1, keepdims=True)
    var = jnp.mean((y - mean) ** 2, axis=-1, keepdims=True)
    y = (y - mean) / jnp.sqrt(var + 1e-5) * params["ln_g"] + params["ln_b"]
    h1 = y @ params["w1"] + params["b1"]
    g = h1 * 0.5 * (1.0 + jax.lax.erf(h1 / math.sqrt(2.0)))
    ff = g @ params["w2"] + params["b2"]
    return ff, attn


if __name__ == "__main__":
    # Small, module-consistent shapes (module: d_model=768, H=12, d_k=d_v=64, d_ff=4*d_model)
    B, S = 2, 8
    d_model, d_k, d_v, n_heads, d_ff = 64, 16, 16, 4, 256

    key = jax.random.PRNGKey(0)
    ks = jax.random.split(key, 16)
    init = lambda k, shape: (0.02 * jax.random.normal(k, shape)).astype(jnp.float32)

    params = {
        "wq": init(ks[0], (d_model, n_heads * d_k)), "bq": init(ks[1], (1, n_heads * d_k)),
        "wk": init(ks[2], (d_model, n_heads * d_k)), "bk": init(ks[3], (1, n_heads * d_k)),
        "wv": init(ks[4], (d_model, n_heads * d_v)), "bv": init(ks[5], (1, n_heads * d_v)),
        "wo": init(ks[6], (n_heads * d_v, d_model)), "bo": init(ks[7], (1, d_model)),
        "ln_g": jnp.ones((1, d_model), jnp.float32), "ln_b": jnp.zeros((1, d_model), jnp.float32),
        "w1": init(ks[8], (d_model, d_ff)), "b1": init(ks[9], (1, d_ff)),
        "w2": init(ks[10], (d_ff, d_model)), "b2": init(ks[11], (1, d_model)),
    }

    x = jax.random.normal(ks[12], (B, S, d_model), jnp.float32)
    # padding-style self-attention mask: last two key positions masked out
    mask = jnp.zeros((B, S, S), jnp.int32).at[:, :, S - 2:].set(1)

    out, attn = encoder_layer(x, mask, params, n_heads=n_heads, d_k=d_k, d_v=d_v)
    out, attn = jax.block_until_ready((out, attn))

    ref_out, ref_attn = reference_encoder_layer(x, mask, params,
                                                n_heads=n_heads, d_k=d_k, d_v=d_v)
    # bf16 MXU operands + approx softmax reciprocal -> slightly loose tolerance for out;
    # attn is additionally stored in bf16, so its tolerance is looser still.
    np.testing.assert_allclose(np.asarray(out), np.asarray(ref_out), atol=5e-3, rtol=5e-3)
    np.testing.assert_allclose(np.asarray(attn.astype(jnp.float32)), np.asarray(ref_attn),
                               atol=2e-2, rtol=2e-2)

    print("KERNEL_OK")
</pallas_src>

<mosaic_0001>
module attributes {stable_mosaic.version = 11 : i64} {
  func.func @_encoder_layer_kernel(%arg0: i32, %arg1: memref<1x8x64xf32, #tpu.memory_space<vmem>>, %arg2: memref<1x8x8xi8, #tpu.memory_space<vmem>>, %arg3: memref<64x192xbf16, #tpu.memory_space<vmem>>, %arg4: memref<1x192xf32, #tpu.memory_space<vmem>>, %arg5: memref<64x64xbf16, #tpu.memory_space<vmem>>, %arg6: memref<4x64xf32, #tpu.memory_space<vmem>>, %arg7: memref<64x256xbf16, #tpu.memory_space<vmem>>, %arg8: memref<1x256xf32, #tpu.memory_space<vmem>>, %arg9: memref<256x64xbf16, #tpu.memory_space<vmem>>, %arg10: memref<1x8x64xf32, #tpu.memory_space<vmem>>, %arg11: memref<1x4x8x8xbf16, #tpu.memory_space<vmem>>, %arg12: memref<4x1x8x16xbf16, #tpu.memory_space<vmem>>, %arg13: memref<4x1x8x16xbf16, #tpu.memory_space<vmem>>, %arg14: memref<4x1x8x16xbf16, #tpu.memory_space<vmem>>, %arg15: memref<4x1x8x16xbf16, #tpu.memory_space<vmem>>, %arg16: memref<8x64xbf16, #tpu.memory_space<vmem>>) attributes {dimension_semantics = [#tpu.dimension_semantics<parallel>], iteration_bounds = array<i64: 2>, scalar_prefetch = 0 : i64, scratch_operands = 5 : i64, tpu.core_type = #tpu.core_type<tc>, window_params = [{transform_indices = @transform_0, window_bounds = array<i64: 1, 8, 64>}, {transform_indices = @transform_1, window_bounds = array<i64: 1, 8, 8>}, {pipeline_mode = #tpu.pipeline_mode<synchronous>, transform_indices = @transform_2, window_bounds = array<i64: 64, 192>}, {pipeline_mode = #tpu.pipeline_mode<synchronous>, transform_indices = @transform_3, window_bounds = array<i64: 1, 192>}, {pipeline_mode = #tpu.pipeline_mode<synchronous>, transform_indices = @transform_4, window_bounds = array<i64: 64, 64>}, {pipeline_mode = #tpu.pipeline_mode<synchronous>, transform_indices = @transform_5, window_bounds = array<i64: 4, 64>}, {pipeline_mode = #tpu.pipeline_mode<synchronous>, transform_indices = @transform_6, window_bounds = array<i64: 64, 256>}, {pipeline_mode = #tpu.pipeline_mode<synchronous>, transform_indices = @transform_7, window_bounds = array<i64: 1, 256>}, {pipeline_mode = #tpu.pipeline_mode<synchronous>, transform_indices = @transform_8, window_bounds = array<i64: 256, 64>}, {transform_indices = @transform_9, window_bounds = array<i64: 1, 8, 64>}, {transform_indices = @transform_10, window_bounds = array<i64: 1, 4, 8, 8>}]} {
    %c0 = arith.constant 0 : index
    %c0_0 = arith.constant 0 : index
    %c0_1 = arith.constant 0 : index
    %0 = vector.load %arg1[%c0, %c0_0, %c0_1] : memref<1x8x64xf32, #tpu.memory_space<vmem>>, vector<1x8x64xf32>
    %1 = vector.shape_cast %0 : vector<1x8x64xf32> to vector<8x64xf32>
    %2 = arith.truncf %1 : vector<8x64xf32> to vector<8x64xbf16>
    %c0_2 = arith.constant 0 : index
    %c0_3 = arith.constant 0 : index
    %3 = vector.load %arg3[%c0_2, %c0_3] : memref<64x192xbf16, #tpu.memory_space<vmem>>, vector<64x192xbf16>
    %cst = arith.constant dense<0.000000e+00> : vector<8x192xf32>
    %4 = tpu.matmul %2, %3, %cst {dimension_numbers = #tpu.dot_dimension_numbers<[1], [0], [0], [1], [0, 0, 1, 1], [], []>} : vector<8x64xbf16>, vector<64x192xbf16>, vector<8x192xf32> -> vector<8x192xf32>
    %c0_4 = arith.constant 0 : index
    %c0_5 = arith.constant 0 : index
    %5 = vector.load %arg4[%c0_4, %c0_5] : memref<1x192xf32, #tpu.memory_space<vmem>>, vector<1x192xf32>
    %6 = vector.broadcast %5 : vector<1x192xf32> to vector<8x192xf32>
    %7 = arith.addf %4, %6 : vector<8x192xf32>
    %8 = vector.extract_strided_slice %7 {offsets = [0, 0], sizes = [8, 16], strides = [1, 1]} : vector<8x192xf32> to vector<8x16xf32>
    %cst_6 = arith.constant 2.500000e-01 : f32
    %9 = vector.broadcast %cst_6 : f32 to vector<8x16xf32>
    %10 = arith.mulf %8, %9 : vector<8x16xf32>
    %11 = arith.truncf %10 : vector<8x16xf32> to vector<8x16xbf16>
    %12 = vector.shape_cast %11 : vector<8x16xbf16> to vector<1x8x16xbf16>
    %c0_7 = arith.constant 0 : index
    %c0_8 = arith.constant 0 : index
    %c0_9 = arith.constant 0 : index
    %c0_10 = arith.constant 0 : index
    %13 = vector.load %arg12[%c0_7, %c0_8, %c0_9, %c0_10] : memref<4x1x8x16xbf16, #tpu.memory_space<vmem>>, vector<1x1x8x16xbf16>
    %14 = vector.shape_cast %13 : vector<1x1x8x16xbf16> to vector<1x8x16xbf16>
    %15 = vector.shape_cast %12 : vector<1x8x16xbf16> to vector<1x1x8x16xbf16>
    tpu.vector_store %arg12[%c0_7, %c0_8, %c0_9, %c0_10], %15 {strides = array<i32>} : memref<4x1x8x16xbf16, #tpu.memory_space<vmem>>, vector<1x1x8x16xbf16>,
    %16 = vector.extract_strided_slice %7 {offsets = [0, 64], sizes = [8, 16], strides = [1, 1]} : vector<8x192xf32> to vector<8x16xf32>
    %17 = arith.truncf %16 : vector<8x16xf32> to vector<8x16xbf16>
    %18 = vector.shape_cast %17 : vector<8x16xbf16> to vector<1x8x16xbf16>
    %c0_11 = arith.constant 0 : index
    %c0_12 = arith.constant 0 : index
    %c0_13 = arith.constant 0 : index
    %c0_14 = arith.constant 0 : index
    %19 = vector.load %arg13[%c0_11, %c0_12, %c0_13, %c0_14] : memref<4x1x8x16xbf16, #tpu.memory_space<vmem>>, vector<1x1x8x16xbf16>
    %20 = vector.shape_cast %19 : vector<1x1x8x16xbf16> to vector<1x8x16xbf16>
    %21 = vector.shape_cast %18 : vector<1x8x16xbf16> to vector<1x1x8x16xbf16>
    tpu.vector_store %arg13[%c0_11, %c0_12, %c0_13, %c0_14], %21 {strides = array<i32>} : memref<4x1x8x16xbf16, #tpu.memory_space<vmem>>, vector<1x1x8x16xbf16>,
    %22 = vector.extract_strided_slice %7 {offsets = [0, 128], sizes = [8, 16], strides = [1, 1]} : vector<8x192xf32> to vector<8x16xf32>
    %23 = arith.truncf %22 : vector<8x16xf32> to vector<8x16xbf16>
    %24 = vector.shape_cast %23 : vector<8x16xbf16> to vector<1x8x16xbf16>
    %c0_15 = arith.constant 0 : index
    %c0_16 = arith.constant 0 : index
    %c0_17 = arith.constant 0 : index
    %c0_18 = arith.constant 0 : index
    %25 = vector.load %arg14[%c0_15, %c0_16, %c0_17, %c0_18] : memref<4x1x8x16xbf16, #tpu.memory_space<vmem>>, vector<1x1x8x16xbf16>
    %26 = vector.shape_cast %25 : vector<1x1x8x16xbf16> to vector<1x8x16xbf16>
    %27 = vector.shape_cast %24 : vector<1x8x16xbf16> to vector<1x1x8x16xbf16>
    tpu.vector_store %arg14[%c0_15, %c0_16, %c0_17, %c0_18], %27 {strides = array<i32>} : memref<4x1x8x16xbf16, #tpu.memory_space<vmem>>, vector<1x1x8x16xbf16>,
    %28 = vector.extract_strided_slice %7 {offsets = [0, 16], sizes = [8, 16], strides = [1, 1]} : vector<8x192xf32> to vector<8x16xf32>
    %cst_19 = arith.constant 2.500000e-01 : f32
    %29 = vector.broadcast %cst_19 : f32 to vector<8x16xf32>
    %30 = arith.mulf %28, %29 : vector<8x16xf32>
    %31 = arith.truncf %30 : vector<8x16xf32> to vector<8x16xbf16>
    %32 = vector.shape_cast %31 : vector<8x16xbf16> to vector<1x8x16xbf16>
    %c1 = arith.constant 1 : index
    %c0_20 = arith.constant 0 : index
    %c0_21 = arith.constant 0 : index
    %c0_22 = arith.constant 0 : index
    %33 = vector.load %arg12[%c1, %c0_20, %c0_21, %c0_22] : memref<4x1x8x16xbf16, #tpu.memory_space<vmem>>, vector<1x1x8x16xbf16>
    %34 = vector.shape_cast %33 : vector<1x1x8x16xbf16> to vector<1x8x16xbf16>
    %35 = vector.shape_cast %32 : vector<1x8x16xbf16> to vector<1x1x8x16xbf16>
    tpu.vector_store %arg12[%c1, %c0_20, %c0_21, %c0_22], %35 {strides = array<i32>} : memref<4x1x8x16xbf16, #tpu.memory_space<vmem>>, vector<1x1x8x16xbf16>,
    %36 = vector.extract_strided_slice %7 {offsets = [0, 80], sizes = [8, 16], strides = [1, 1]} : vector<8x192xf32> to vector<8x16xf32>
    %37 = arith.truncf %36 : vector<8x16xf32> to vector<8x16xbf16>
    %38 = vector.shape_cast %37 : vector<8x16xbf16> to vector<1x8x16xbf16>
    %c1_23 = arith.constant 1 : index
    %c0_24 = arith.constant 0 : index
    %c0_25 = arith.constant 0 : index
    %c0_26 = arith.constant 0 : index
    %39 = vector.load %arg13[%c1_23, %c0_24, %c0_25, %c0_26] : memref<4x1x8x16xbf16, #tpu.memory_space<vmem>>, vector<1x1x8x16xbf16>
    %40 = vector.shape_cast %39 : vector<1x1x8x16xbf16> to vector<1x8x16xbf16>
    %41 = vector.shape_cast %38 : vector<1x8x16xbf16> to vector<1x1x8x16xbf16>
    tpu.vector_store %arg13[%c1_23, %c0_24, %c0_25, %c0_26], %41 {strides = array<i32>} : memref<4x1x8x16xbf16, #tpu.memory_space<vmem>>, vector<1x1x8x16xbf16>,
    %42 = vector.extract_strided_slice %7 {offsets = [0, 144], sizes = [8, 16], strides = [1, 1]} : vector<8x192xf32> to vector<8x16xf32>
    %43 = arith.truncf %42 : vector<8x16xf32> to vector<8x16xbf16>
    %44 = vector.shape_cast %43 : vector<8x16xbf16> to vector<1x8x16xbf16>
    %c1_27 = arith.constant 1 : index
    %c0_28 = arith.constant 0 : index
    %c0_29 = arith.constant 0 : index
    %c0_30 = arith.constant 0 : index
    %45 = vector.load %arg14[%c1_27, %c0_28, %c0_29, %c0_30] : memref<4x1x8x16xbf16, #tpu.memory_space<vmem>>, vector<1x1x8x16xbf16>
    %46 = vector.shape_cast %45 : vector<1x1x8x16xbf16> to vector<1x8x16xbf16>
    %47 = vector.shape_cast %44 : vector<1x8x16xbf16> to vector<1x1x8x16xbf16>
    tpu.vector_store %arg14[%c1_27, %c0_28, %c0_29, %c0_30], %47 {strides = array<i32>} : memref<4x1x8x16xbf16, #tpu.memory_space<vmem>>, vector<1x1x8x16xbf16>,
    %48 = vector.extract_strided_slice %7 {offsets = [0, 32], sizes = [8, 16], strides = [1, 1]} : vector<8x192xf32> to vector<8x16xf32>
    %cst_31 = arith.constant 2.500000e-01 : f32
    %49 = vector.broadcast %cst_31 : f32 to vector<8x16xf32>
    %50 = arith.mulf %48, %49 : vector<8x16xf32>
    %51 = arith.truncf %50 : vector<8x16xf32> to vector<8x16xbf16>
    %52 = vector.shape_cast %51 : vector<8x16xbf16> to vector<1x8x16xbf16>
    %c2 = arith.constant 2 : index
    %c0_32 = arith.constant 0 : index
    %c0_33 = arith.constant 0 : index
    %c0_34 = arith.constant 0 : index
    %53 = vector.load %arg12[%c2, %c0_32, %c0_33, %c0_34] : memref<4x1x8x16xbf16, #tpu.memory_space<vmem>>, vector<1x1x8x16xbf16>
    %54 = vector.shape_cast %53 : vector<1x1x8x16xbf16> to vector<1x8x16xbf16>
    %55 = vector.shape_cast %52 : vector<1x8x16xbf16> to vector<1x1x8x16xbf16>
    tpu.vector_store %arg12[%c2, %c0_32, %c0_33, %c0_34], %55 {strides = array<i32>} : memref<4x1x8x16xbf16, #tpu.memory_space<vmem>>, vector<1x1x8x16xbf16>,
    %56 = vector.extract_strided_slice %7 {offsets = [0, 96], sizes = [8, 16], strides = [1, 1]} : vector<8x192xf32> to vector<8x16xf32>
    %57 = arith.truncf %56 : vector<8x16xf32> to vector<8x16xbf16>
    %58 = vector.shape_cast %57 : vector<8x16xbf16> to vector<1x8x16xbf16>
    %c2_35 = arith.constant 2 : index
    %c0_36 = arith.constant 0 : index
    %c0_37 = arith.constant 0 : index
    %c0_38 = arith.constant 0 : index
    %59 = vector.load %arg13[%c2_35, %c0_36, %c0_37, %c0_38] : memref<4x1x8x16xbf16, #tpu.memory_space<vmem>>, vector<1x1x8x16xbf16>
    %60 = vector.shape_cast %59 : vector<1x1x8x16xbf16> to vector<1x8x16xbf16>
    %61 = vector.shape_cast %58 : vector<1x8x16xbf16> to vector<1x1x8x16xbf16>
    tpu.vector_store %arg13[%c2_35, %c0_36, %c0_37, %c0_38], %61 {strides = array<i32>} : memref<4x1x8x16xbf16, #tpu.memory_space<vmem>>, vector<1x1x8x16xbf16>,
    %62 = vector.extract_strided_slice %7 {offsets = [0, 160], sizes = [8, 16], strides = [1, 1]} : vector<8x192xf32> to vector<8x16xf32>
    %63 = arith.truncf %62 : vector<8x16xf32> to vector<8x16xbf16>
    %64 = vector.shape_cast %63 : vector<8x16xbf16> to vector<1x8x16xbf16>
    %c2_39 = arith.constant 2 : index
    %c0_40 = arith.constant 0 : index
    %c0_41 = arith.constant 0 : index
    %c0_42 = arith.constant 0 : index
    %65 = vector.load %arg14[%c2_39, %c0_40, %c0_41, %c0_42] : memref<4x1x8x16xbf16, #tpu.memory_space<vmem>>, vector<1x1x8x16xbf16>
    %66 = vector.shape_cast %65 : vector<1x1x8x16xbf16> to vector<1x8x16xbf16>
    %67 = vector.shape_cast %64 : vector<1x8x16xbf16> to vector<1x1x8x16xbf16>
    tpu.vector_store %arg14[%c2_39, %c0_40, %c0_41, %c0_42], %67 {strides = array<i32>} : memref<4x1x8x16xbf16, #tpu.memory_space<vmem>>, vector<1x1x8x16xbf16>,
    %68 = vector.extract_strided_slice %7 {offsets = [0, 48], sizes = [8, 16], strides = [1, 1]} : vector<8x192xf32> to vector<8x16xf32>
    %cst_43 = arith.constant 2.500000e-01 : f32
    %69 = vector.broadcast %cst_43 : f32 to vector<8x16xf32>
    %70 = arith.mulf %68, %69 : vector<8x16xf32>
    %71 = arith.truncf %70 : vector<8x16xf32> to vector<8x16xbf16>
    %72 = vector.shape_cast %71 : vector<8x16xbf16> to vector<1x8x16xbf16>
    %c3 = arith.constant 3 : index
    %c0_44 = arith.constant 0 : index
    %c0_45 = arith.constant 0 : index
    %c0_46 = arith.constant 0 : index
    %73 = vector.load %arg12[%c3, %c0_44, %c0_45, %c0_46] : memref<4x1x8x16xbf16, #tpu.memory_space<vmem>>, vector<1x1x8x16xbf16>
    %74 = vector.shape_cast %73 : vector<1x1x8x16xbf16> to vector<1x8x16xbf16>
    %75 = vector.shape_cast %72 : vector<1x8x16xbf16> to vector<1x1x8x16xbf16>
    tpu.vector_store %arg12[%c3, %c0_44, %c0_45, %c0_46], %75 {strides = array<i32>} : memref<4x1x8x16xbf16, #tpu.memory_space<vmem>>, vector<1x1x8x16xbf16>,
    %76 = vector.extract_strided_slice %7 {offsets = [0, 112], sizes = [8, 16], strides = [1, 1]} : vector<8x192xf32> to vector<8x16xf32>
    %77 = arith.truncf %76 : vector<8x16xf32> to vector<8x16xbf16>
    %78 = vector.shape_cast %77 : vector<8x16xbf16> to vector<1x8x16xbf16>
    %c3_47 = arith.constant 3 : index
    %c0_48 = arith.constant 0 : index
    %c0_49 = arith.constant 0 : index
    %c0_50 = arith.constant 0 : index
    %79 = vector.load %arg13[%c3_47, %c0_48, %c0_49, %c0_50] : memref<4x1x8x16xbf16, #tpu.memory_space<vmem>>, vector<1x1x8x16xbf16>
    %80 = vector.shape_cast %79 : vector<1x1x8x16xbf16> to vector<1x8x16xbf16>
    %81 = vector.shape_cast %78 : vector<1x8x16xbf16> to vector<1x1x8x16xbf16>
    tpu.vector_store %arg13[%c3_47, %c0_48, %c0_49, %c0_50], %81 {strides = array<i32>} : memref<4x1x8x16xbf16, #tpu.memory_space<vmem>>, vector<1x1x8x16xbf16>,
    %82 = vector.extract_strided_slice %7 {offsets = [0, 176], sizes = [8, 16], strides = [1, 1]} : vector<8x192xf32> to vector<8x16xf32>
    %83 = arith.truncf %82 : vector<8x16xf32> to vector<8x16xbf16>
    %84 = vector.shape_cast %83 : vector<8x16xbf16> to vector<1x8x16xbf16>
    %c3_51 = arith.constant 3 : index
    %c0_52 = arith.constant 0 : index
    %c0_53 = arith.constant 0 : index
    %c0_54 = arith.constant 0 : index
    %85 = vector.load %arg14[%c3_51, %c0_52, %c0_53, %c0_54] : memref<4x1x8x16xbf16, #tpu.memory_space<vmem>>, vector<1x1x8x16xbf16>
    %86 = vector.shape_cast %85 : vector<1x1x8x16xbf16> to vector<1x8x16xbf16>
    %87 = vector.shape_cast %84 : vector<1x8x16xbf16> to vector<1x1x8x16xbf16>
    tpu.vector_store %arg14[%c3_51, %c0_52, %c0_53, %c0_54], %87 {strides = array<i32>} : memref<4x1x8x16xbf16, #tpu.memory_space<vmem>>, vector<1x1x8x16xbf16>,
    %c0_55 = arith.constant 0 : index
    %c0_56 = arith.constant 0 : index
    %c0_57 = arith.constant 0 : index
    %88 = vector.load %arg2[%c0_55, %c0_56, %c0_57] : memref<1x8x8xi8, #tpu.memory_space<vmem>>, vector<1x8x8xi8>
    %89 = vector.shape_cast %88 : vector<1x8x8xi8> to vector<8x8xi8>
    %c0_i8 = arith.constant 0 : i8
    %90 = vector.broadcast %c0_i8 : i8 to vector<8x8xi8>
    %91 = arith.cmpi ne, %89, %90 : vector<8x8xi8>
    %c0_i32 = arith.constant 0 : i32
    %c4_i32 = arith.constant 4 : i32
    %92 = arith.addi %c0_i32, %c4_i32 : i32
    %c1_i32 = arith.constant 1 : i32
    scf.for %arg17 = %c0_i32 to %92 step %c1_i32  : i32 {
      %c1_i32_112 = arith.constant 1 : i32
      %160 = arith.muli %arg17, %c1_i32_112 : i32
      %c0_i32_113 = arith.constant 0 : i32
      %161 = arith.addi %c0_i32_113, %160 : i32
      %162 = arith.index_cast %161 : i32 to index
      %c0_114 = arith.constant 0 : index
      %c0_115 = arith.constant 0 : index
      %c0_116 = arith.constant 0 : index
      %163 = vector.load %arg12[%162, %c0_114, %c0_115, %c0_116] : memref<4x1x8x16xbf16, #tpu.memory_space<vmem>>, vector<1x1x8x16xbf16>
      %164 = vector.shape_cast %163 : vector<1x1x8x16xbf16> to vector<8x16xbf16>
      %165 = arith.index_cast %161 : i32 to index
      %c0_117 = arith.constant 0 : index
      %c0_118 = arith.constant 0 : index
      %c0_119 = arith.constant 0 : index
      %166 = vector.load %arg13[%165, %c0_117, %c0_118, %c0_119] : memref<4x1x8x16xbf16, #tpu.memory_space<vmem>>, vector<1x1x8x16xbf16>
      %167 = vector.shape_cast %166 : vector<1x1x8x16xbf16> to vector<8x16xbf16>
      %168 = arith.index_cast %161 : i32 to index
      %c0_120 = arith.constant 0 : index
      %c0_121 = arith.constant 0 : index
      %c0_122 = arith.constant 0 : index
      %169 = vector.load %arg14[%168, %c0_120, %c0_121, %c0_122] : memref<4x1x8x16xbf16, #tpu.memory_space<vmem>>, vector<1x1x8x16xbf16>
      %170 = vector.shape_cast %169 : vector<1x1x8x16xbf16> to vector<8x16xbf16>
      %cst_123 = arith.constant dense<0.000000e+00> : vector<8x8xf32>
      %171 = tpu.matmul %164, %167, %cst_123 {dimension_numbers = #tpu.dot_dimension_numbers<[1], [1], [0], [0], [0, 0, 1, 0], [], []>} : vector<8x16xbf16>, vector<8x16xbf16>, vector<8x8xf32> -> vector<8x8xf32>
      %cst_124 = arith.constant -1.000000e+09 : f32
      %172 = vector.broadcast %cst_124 : f32 to vector<8x8xf32>
      %173 = arith.select %91, %172, %171 : vector<8x8xi1>, vector<8x8xf32>
      %cst_125 = arith.constant dense<0xFF800000> : vector<8xf32>
      %174 = vector.multi_reduction <maximumf>, %173, %cst_125 [1] : vector<8x8xf32> to vector<8xf32>
      %175 = vector.shape_cast %174 : vector<8xf32> to vector<8x1xf32>
      %176 = vector.broadcast %175 : vector<8x1xf32> to vector<8x8xf32>
      %177 = arith.subf %173, %176 : vector<8x8xf32>
      %178 = math.exp %177 : vector<8x8xf32>
      %cst_126 = arith.constant dense<0.000000e+00> : vector<8xf32>
      %179 = vector.multi_reduction <add>, %178, %cst_126 [1] : vector<8x8xf32> to vector<8xf32>
      %180 = vector.shape_cast %179 : vector<8xf32> to vector<8x1xf32>
      %181 = tpu.reciprocal %180 {approx = true} : vector<8x1xf32> -> vector<8x1xf32>
      %182 = vector.broadcast %181 : vector<8x1xf32> to vector<8x8xf32>
      %183 = arith.mulf %178, %182 : vector<8x8xf32>
      %184 = arith.truncf %183 : vector<8x8xf32> to vector<8x8xbf16>
      %c0_127 = arith.constant 0 : index
      %185 = arith.index_cast %161 : i32 to index
      %c0_128 = arith.constant 0 : index
      %c0_129 = arith.constant 0 : index
      %186 = vector.load %arg11[%c0_127, %185, %c0_128, %c0_129] : memref<1x4x8x8xbf16, #tpu.memory_space<vmem>>, vector<1x1x8x8xbf16>
      %187 = vector.shape_cast %186 : vector<1x1x8x8xbf16> to vector<8x8xbf16>
      %188 = vector.shape_cast %184 : vector<8x8xbf16> to vector<1x1x8x8xbf16>
      tpu.vector_store %arg11[%c0_127, %185, %c0_128, %c0_129], %188 {strides = array<i32>} : memref<1x4x8x8xbf16, #tpu.memory_space<vmem>>, vector<1x1x8x8xbf16>,
      %189 = arith.truncf %183 : vector<8x8xf32> to vector<8x8xbf16>
      %cst_130 = arith.constant dense<0.000000e+00> : vector<8x16xf32>
      %190 = tpu.matmul %189, %170, %cst_130 {dimension_numbers = #tpu.dot_dimension_numbers<[1], [0], [0], [1], [0, 0, 1, 1], [], []>} : vector<8x8xbf16>, vector<8x16xbf16>, vector<8x16xf32> -> vector<8x16xf32>
      %191 = arith.truncf %190 : vector<8x16xf32> to vector<8x16xbf16>
      %192 = arith.index_cast %161 : i32 to index
      %c0_131 = arith.constant 0 : index
      %c0_132 = arith.constant 0 : index
      %c0_133 = arith.constant 0 : index
      %193 = vector.load %arg15[%192, %c0_131, %c0_132, %c0_133] : memref<4x1x8x16xbf16, #tpu.memory_space<vmem>>, vector<1x1x8x16xbf16>
      %194 = vector.shape_cast %193 : vector<1x1x8x16xbf16> to vector<8x16xbf16>
      %195 = vector.shape_cast %191 : vector<8x16xbf16> to vector<1x1x8x16xbf16>
      tpu.vector_store %arg15[%192, %c0_131, %c0_132, %c0_133], %195 {strides = array<i32>} : memref<4x1x8x16xbf16, #tpu.memory_space<vmem>>, vector<1x1x8x16xbf16>,
    }
    %c4_i32_58 = arith.constant 4 : i32
    %c0_59 = arith.constant 0 : index
    %c0_60 = arith.constant 0 : index
    %c0_61 = arith.constant 0 : index
    %c0_62 = arith.constant 0 : index
    %93 = vector.load %arg15[%c0_59, %c0_60, %c0_61, %c0_62] : memref<4x1x8x16xbf16, #tpu.memory_space<vmem>>, vector<1x1x8x16xbf16>
    %94 = vector.shape_cast %93 : vector<1x1x8x16xbf16> to vector<1x8x16xbf16>
    %95 = vector.shape_cast %94 : vector<1x8x16xbf16> to vector<8x16xbf16>
    %c0_63 = arith.constant 0 : index
    %c0_64 = arith.constant 0 : index
    %96 = vector.load %arg16[%c0_63, %c0_64] : memref<8x64xbf16, #tpu.memory_space<vmem>>, vector<8x16xbf16>
    tpu.vector_store %arg16[%c0_63, %c0_64], %95 {strides = array<i32>} : memref<8x64xbf16, #tpu.memory_space<vmem>>, vector<8x16xbf16>,
    %c1_65 = arith.constant 1 : index
    %c0_66 = arith.constant 0 : index
    %c0_67 = arith.constant 0 : index
    %c0_68 = arith.constant 0 : index
    %97 = vector.load %arg15[%c1_65, %c0_66, %c0_67, %c0_68] : memref<4x1x8x16xbf16, #tpu.memory_space<vmem>>, vector<1x1x8x16xbf16>
    %98 = vector.shape_cast %97 : vector<1x1x8x16xbf16> to vector<1x8x16xbf16>
    %99 = vector.shape_cast %98 : vector<1x8x16xbf16> to vector<8x16xbf16>
    %c0_69 = arith.constant 0 : index
    %c16 = arith.constant 16 : index
    %100 = vector.load %arg16[%c0_69, %c16] : memref<8x64xbf16, #tpu.memory_space<vmem>>, vector<8x16xbf16>
    tpu.vector_store %arg16[%c0_69, %c16], %99 {strides = array<i32>} : memref<8x64xbf16, #tpu.memory_space<vmem>>, vector<8x16xbf16>,
    %c2_70 = arith.constant 2 : index
    %c0_71 = arith.constant 0 : index
    %c0_72 = arith.constant 0 : index
    %c0_73 = arith.constant 0 : index
    %101 = vector.load %arg15[%c2_70, %c0_71, %c0_72, %c0_73] : memref<4x1x8x16xbf16, #tpu.memory_space<vmem>>, vector<1x1x8x16xbf16>
    %102 = vector.shape_cast %101 : vector<1x1x8x16xbf16> to vector<1x8x16xbf16>
    %103 = vector.shape_cast %102 : vector<1x8x16xbf16> to vector<8x16xbf16>
    %c0_74 = arith.constant 0 : index
    %c32 = arith.constant 32 : index
    %104 = vector.load %arg16[%c0_74, %c32] : memref<8x64xbf16, #tpu.memory_space<vmem>>, vector<8x16xbf16>
    tpu.vector_store %arg16[%c0_74, %c32], %103 {strides = array<i32>} : memref<8x64xbf16, #tpu.memory_space<vmem>>, vector<8x16xbf16>,
    %c3_75 = arith.constant 3 : index
    %c0_76 = arith.constant 0 : index
    %c0_77 = arith.constant 0 : index
    %c0_78 = arith.constant 0 : index
    %105 = vector.load %arg15[%c3_75, %c0_76, %c0_77, %c0_78] : memref<4x1x8x16xbf16, #tpu.memory_space<vmem>>, vector<1x1x8x16xbf16>
    %106 = vector.shape_cast %105 : vector<1x1x8x16xbf16> to vector<1x8x16xbf16>
    %107 = vector.shape_cast %106 : vector<1x8x16xbf16> to vector<8x16xbf16>
    %c0_79 = arith.constant 0 : index
    %c48 = arith.constant 48 : index
    %108 = vector.load %arg16[%c0_79, %c48] : memref<8x64xbf16, #tpu.memory_space<vmem>>, vector<8x16xbf16>
    tpu.vector_store %arg16[%c0_79, %c48], %107 {strides = array<i32>} : memref<8x64xbf16, #tpu.memory_space<vmem>>, vector<8x16xbf16>,
    %c0_80 = arith.constant 0 : index
    %c0_81 = arith.constant 0 : index
    %109 = vector.load %arg6[%c0_80, %c0_81] : memref<4x64xf32, #tpu.memory_space<vmem>>, vector<1x64xf32>
    %c1_82 = arith.constant 1 : index
    %c0_83 = arith.constant 0 : index
    %110 = vector.load %arg6[%c1_82, %c0_83] : memref<4x64xf32, #tpu.memory_space<vmem>>, vector<1x64xf32>
    %c2_84 = arith.constant 2 : index
    %c0_85 = arith.constant 0 : index
    %111 = vector.load %arg6[%c2_84, %c0_85] : memref<4x64xf32, #tpu.memory_space<vmem>>, vector<1x64xf32>
    %c3_86 = arith.constant 3 : index
    %c0_87 = arith.constant 0 : index
    %112 = vector.load %arg6[%c3_86, %c0_87] : memref<4x64xf32, #tpu.memory_space<vmem>>, vector<1x64xf32>
    %c0_88 = arith.constant 0 : index
    %c0_89 = arith.constant 0 : index
    %113 = vector.load %arg16[%c0_88, %c0_89] : memref<8x64xbf16, #tpu.memory_space<vmem>>, vector<8x64xbf16>
    %c0_90 = arith.constant 0 : index
    %c0_91 = arith.constant 0 : index
    %114 = vector.load %arg5[%c0_90, %c0_91] : memref<64x64xbf16, #tpu.memory_space<vmem>>, vector<64x64xbf16>
    %cst_92 = arith.constant dense<0.000000e+00> : vector<8x64xf32>
    %115 = tpu.matmul %113, %114, %cst_92 {dimension_numbers = #tpu.dot_dimension_numbers<[1], [0], [0], [1], [0, 0, 1, 1], [], []>} : vector<8x64xbf16>, vector<64x64xbf16>, vector<8x64xf32> -> vector<8x64xf32>
    %116 = vector.broadcast %109 : vector<1x64xf32> to vector<8x64xf32>
    %117 = arith.addf %115, %116 : vector<8x64xf32>
    %118 = arith.addf %117, %1 : vector<8x64xf32>
    %cst_93 = arith.constant dense<0.000000e+00> : vector<8xf32>
    %119 = vector.multi_reduction <add>, %118, %cst_93 [1] : vector<8x64xf32> to vector<8xf32>
    %120 = vector.shape_cast %119 : vector<8xf32> to vector<8x1xf32>
    %cst_94 = arith.constant 6.400000e+01 : f32
    %121 = vector.broadcast %cst_94 : f32 to vector<8x1xf32>
    %122 = arith.divf %120, %121 : vector<8x1xf32>
    %123 = vector.broadcast %122 : vector<8x1xf32> to vector<8x64xf32>
    %124 = arith.subf %118, %123 : vector<8x64xf32>
    %125 = arith.mulf %124, %124 : vector<8x64xf32>
    %cst_95 = arith.constant dense<0.000000e+00> : vector<8xf32>
    %126 = vector.multi_reduction <add>, %125, %cst_95 [1] : vector<8x64xf32> to vector<8xf32>
    %127 = vector.shape_cast %126 : vector<8xf32> to vector<8x1xf32>
    %cst_96 = arith.constant 6.400000e+01 : f32
    %128 = vector.broadcast %cst_96 : f32 to vector<8x1xf32>
    %129 = arith.divf %127, %128 : vector<8x1xf32>
    %cst_97 = arith.constant 9.99999974E-6 : f32
    %130 = vector.broadcast %cst_97 : f32 to vector<8x1xf32>
    %131 = arith.addf %129, %130 : vector<8x1xf32>
    %132 = math.rsqrt %131 : vector<8x1xf32>
    %133 = vector.broadcast %132 : vector<8x1xf32> to vector<8x64xf32>
    %134 = arith.mulf %124, %133 : vector<8x64xf32>
    %135 = vector.broadcast %110 : vector<1x64xf32> to vector<8x64xf32>
    %136 = arith.mulf %134, %135 : vector<8x64xf32>
    %137 = vector.broadcast %111 : vector<1x64xf32> to vector<8x64xf32>
    %138 = arith.addf %136, %137 : vector<8x64xf32>
    %139 = arith.truncf %138 : vector<8x64xf32> to vector<8x64xbf16>
    %c0_98 = arith.constant 0 : index
    %c0_99 = arith.constant 0 : index
    %140 = vector.load %arg7[%c0_98, %c0_99] : memref<64x256xbf16, #tpu.memory_space<vmem>>, vector<64x256xbf16>
    %cst_100 = arith.constant dense<0.000000e+00> : vector<8x256xf32>
    %141 = tpu.matmul %139, %140, %cst_100 {dimension_numbers = #tpu.dot_dimension_numbers<[1], [0], [0], [1], [0, 0, 1, 1], [], []>} : vector<8x64xbf16>, vector<64x256xbf16>, vector<8x256xf32> -> vector<8x256xf32>
    %c0_101 = arith.constant 0 : index
    %c0_102 = arith.constant 0 : index
    %142 = vector.load %arg8[%c0_101, %c0_102] : memref<1x256xf32, #tpu.memory_space<vmem>>, vector<1x256xf32>
    %143 = vector.broadcast %142 : vector<1x256xf32> to vector<8x256xf32>
    %144 = arith.addf %141, %143 : vector<8x256xf32>
    %cst_103 = arith.constant 5.000000e-01 : f32
    %145 = vector.broadcast %cst_103 : f32 to vector<8x256xf32>
    %146 = arith.mulf %144, %145 : vector<8x256xf32>
    %cst_104 = arith.constant 0.707106769 : f32
    %147 = vector.broadcast %cst_104 : f32 to vector<8x256xf32>
    %148 = arith.mulf %144, %147 : vector<8x256xf32>
    %149 = math.erf %148 : vector<8x256xf32>
    %cst_105 = arith.constant 1.000000e+00 : f32
    %150 = vector.broadcast %cst_105 : f32 to vector<8x256xf32>
    %151 = arith.addf %150, %149 : vector<8x256xf32>
    %152 = arith.mulf %146, %151 : vector<8x256xf32>
    %153 = arith.truncf %152 : vector<8x256xf32> to vector<8x256xbf16>
    %c0_106 = arith.constant 0 : index
    %c0_107 = arith.constant 0 : index
    %154 = vector.load %arg9[%c0_106, %c0_107] : memref<256x64xbf16, #tpu.memory_space<vmem>>, vector<256x64xbf16>
    %cst_108 = arith.constant dense<0.000000e+00> : vector<8x64xf32>
    %155 = tpu.matmul %153, %154, %cst_108 {dimension_numbers = #tpu.dot_dimension_numbers<[1], [0], [0], [1], [0, 0, 1, 1], [], []>} : vector<8x256xbf16>, vector<256x64xbf16>, vector<8x64xf32> -> vector<8x64xf32>
    %156 = vector.broadcast %112 : vector<1x64xf32> to vector<8x64xf32>
    %157 = arith.addf %155, %156 : vector<8x64xf32>
    %158 = vector.shape_cast %157 : vector<8x64xf32> to vector<1x8x64xf32>
    %c0_109 = arith.constant 0 : index
    %c0_110 = arith.constant 0 : index
    %c0_111 = arith.constant 0 : index
    %159 = vector.load %arg10[%c0_109, %c0_110, %c0_111] : memref<1x8x64xf32, #tpu.memory_space<vmem>>, vector<1x8x64xf32>
    tpu.vector_store %arg10[%c0_109, %c0_110, %c0_111], %158 {strides = array<i32>} : memref<1x8x64xf32, #tpu.memory_space<vmem>>, vector<1x8x64xf32>,
    return
  }
  func.func @transform_0(%arg0: i32) -> (i32, i32, i32) {
    %c0_i32 = arith.constant 0 : i32
    %c0_i32_0 = arith.constant 0 : i32
    %c0_i32_1 = arith.constant 0 : i32
    return %arg0, %c0_i32, %c0_i32_0 : i32, i32, i32
  }
  func.func @transform_1(%arg0: i32) -> (i32, i32, i32) {
    %c0_i32 = arith.constant 0 : i32
    %c0_i32_0 = arith.constant 0 : i32
    %c0_i32_1 = arith.constant 0 : i32
    return %arg0, %c0_i32, %c0_i32_0 : i32, i32, i32
  }
  func.func @transform_2(%arg0: i32) -> (i32, i32) {
    %c0_i32 = arith.constant 0 : i32
    %c0_i32_0 = arith.constant 0 : i32
    %c0_i32_1 = arith.constant 0 : i32
    return %c0_i32, %c0_i32_0 : i32, i32
  }
  func.func @transform_3(%arg0: i32) -> (i32, i32) {
    %c0_i32 = arith.constant 0 : i32
    %c0_i32_0 = arith.constant 0 : i32
    %c0_i32_1 = arith.constant 0 : i32
    return %c0_i32, %c0_i32_0 : i32, i32
  }
  func.func @transform_4(%arg0: i32) -> (i32, i32) {
    %c0_i32 = arith.constant 0 : i32
    %c0_i32_0 = arith.constant 0 : i32
    %c0_i32_1 = arith.constant 0 : i32
    return %c0_i32, %c0_i32_0 : i32, i32
  }
  func.func @transform_5(%arg0: i32) -> (i32, i32) {
    %c0_i32 = arith.constant 0 : i32
    %c0_i32_0 = arith.constant 0 : i32
    %c0_i32_1 = arith.constant 0 : i32
    return %c0_i32, %c0_i32_0 : i32, i32
  }
  func.func @transform_6(%arg0: i32) -> (i32, i32) {
    %c0_i32 = arith.constant 0 : i32
    %c0_i32_0 = arith.constant 0 : i32
    %c0_i32_1 = arith.constant 0 : i32
    return %c0_i32, %c0_i32_0 : i32, i32
  }
  func.func @transform_7(%arg0: i32) -> (i32, i32) {
    %c0_i32 = arith.constant 0 : i32
    %c0_i32_0 = arith.constant 0 : i32
    %c0_i32_1 = arith.constant 0 : i32
    return %c0_i32, %c0_i32_0 : i32, i32
  }
  func.func @transform_8(%arg0: i32) -> (i32, i32) {
    %c0_i32 = arith.constant 0 : i32
    %c0_i32_0 = arith.constant 0 : i32
    %c0_i32_1 = arith.constant 0 : i32
    return %c0_i32, %c0_i32_0 : i32, i32
  }
  func.func @transform_9(%arg0: i32) -> (i32, i32, i32) {
    %c0_i32 = arith.constant 0 : i32
    %c0_i32_0 = arith.constant 0 : i32
    %c0_i32_1 = arith.constant 0 : i32
    return %arg0, %c0_i32, %c0_i32_0 : i32, i32, i32
  }
  func.func @transform_10(%arg0: i32) -> (i32, i32, i32, i32) {
    %c0_i32 = arith.constant 0 : i32
    %c0_i32_0 = arith.constant 0 : i32
    %c0_i32_1 = arith.constant 0 : i32
    %c0_i32_2 = arith.constant 0 : i32
    return %arg0, %c0_i32, %c0_i32_0, %c0_i32_1 : i32, i32, i32, i32
  }
}

</mosaic_0001>

<llo_original>
// kernel: tpu_custom_call.1
$region0: #{tpu_custom_call.1}
  #allocation0 [shape = 'u32[]', space=smem, size = 0x4, offset = 0x4, fixed_abs, tag = 'smem constant byte address 0x4 - core index']
  #allocation1 [shape = 'u32[144,128]{1,0:T(1,128)}', space=vmem, size = 0x12000, scoped, tag = 'internal scratch']
  #allocation2 [shape = 'bf16[4,1,8,16]{3,2,1,0:T(8,128)(2,1)}', space=vmem, size = 0x2000, scoped, tag = 'scratch operand']
  #allocation3 [shape = 'bf16[4,1,8,16]{3,2,1,0:T(8,128)(2,1)}', space=vmem, size = 0x2000, scoped, tag = 'scratch operand']
  #allocation4 [shape = 'bf16[4,1,8,16]{3,2,1,0:T(8,128)(2,1)}', space=vmem, size = 0x2000, scoped, tag = 'scratch operand']
  #allocation5 [shape = 'bf16[4,1,8,16]{3,2,1,0:T(8,128)(2,1)}', space=vmem, size = 0x2000, scoped, tag = 'scratch operand']
  #allocation6 [shape = 'bf16[8,64]{1,0:T(8,128)(2,1)}', space=vmem, size = 0x800, scoped, tag = 'scratch operand']
  %s0 = inlined_call_operand.vmem [shape: f32[2,8,64], index: 0, kind: input, shape index: {}]
  %s1 = inlined_call_operand.vmem [shape: s8[2,8,8], index: 1, kind: input, shape index: {}]
  %s2 = inlined_call_operand.vmem [shape: bf16[64,192], index: 2, kind: input, shape index: {}]
  %s3 = inlined_call_operand.vmem [shape: f32[1,192], index: 3, kind: input, shape index: {}]
  %s4 = inlined_call_operand.vmem [shape: bf16[64,64], index: 4, kind: input, shape index: {}]
  %s5 = inlined_call_operand.vmem [shape: f32[4,64], index: 5, kind: input, shape index: {}]
  %s6 = inlined_call_operand.vmem [shape: bf16[64,256], index: 6, kind: input, shape index: {}]
  %s7 = inlined_call_operand.vmem [shape: f32[1,256], index: 7, kind: input, shape index: {}]
  %s8 = inlined_call_operand.vmem [shape: bf16[256,64], index: 8, kind: input, shape index: {}]
  %s9 = inlined_call_operand.hbm [shape: f32[2,8,64], index: 9, kind: output, shape index: {0}]
  %s10 = inlined_call_operand.hbm [shape: bf16[2,4,8,8], index: 10, kind: output, shape index: {1}]
  %11 = xla_tuple %s9, %s10
  %s12 = sld [smem:[#allocation0]]
  $region84: #{tpu_custom_call.1} parent=0
    _
  %s14 = ssub.s32 1, %s12
  %s15 = scalar_select 0, %s14, %s12
  $region1: #{tpu_custom_call.1} parent=0
    #allocation7 [shape = 'u8[8192]{0}', space=vmem, size = 0x2000, scoped, tag = 'output window, operand 0']
    #allocation8 [shape = 's32[2]{0}', space=sflag, size = 0x8, scoped, tag = 'scoped memory for tpu_custom_call.1']
    #allocation9 [shape = 'u8[16384]{0}', space=vmem, size = 0x4000, scoped, tag = 'output window, operand 1']
    #allocation10 [shape = 's32[2]{0}', space=sflag, size = 0x8, scoped, tag = 'scoped memory for tpu_custom_call.1']
    %16 = vsyncpa [#allocation8], 0
    %s17 = scalar_lea.sflag [#allocation8], 1
    %18 = vsyncpa %s17, 0
    %19 = vsyncpa [#allocation10], 0
    %s20 = scalar_lea.sflag [#allocation10], 1
    %21 = vsyncpa %s20, 0
    loop: start=0, step=1, limit=4
    $region2: #{tpu_custom_call.1} parent=1 // loop_pre_header
      _
    $region3: #{tpu_custom_call.1} parent=1 // loop_header
      %s23 = sphi 0, %s27
      %p24 = scmp.ge.s32.totalorder %s23, 4
      %s33 = sphi 0, %s35
      %s36 = sphi 0, %s33
      %s37 = sphi 0, %s36
      %s53 = sphi 0, %s37
      %s59 = sphi 0, %s61
      %s62 = sphi 0, %s59
      %s63 = sphi 0, %s62
      %s79 = sphi 0, %s63
      %s83 = sphi 0, %s83
      %s85 = sphi 0, %s83
      %s86 = sphi 0, %s85
      %s100 = sphi 0, %s86
      %s104 = sphi 0, %s104
      %s106 = sphi 0, %s104
      %s107 = sphi 0, %s106
      %s121 = sphi 0, %s107
      %s125 = sphi 0, %s125
      %s127 = sphi 0, %s125
      %s128 = sphi 0, %s127
      %s142 = sphi 0, %s128
      %s146 = sphi 0, %s146
      %s148 = sphi 0, %s146
      %s149 = sphi 0, %s148
      %s163 = sphi 0, %s149
      %s167 = sphi 0, %s167
      %s169 = sphi 0, %s167
      %s170 = sphi 0, %s169
      %s184 = sphi 0, %s170
      %s188 = sphi 0, %s188
      %s190 = sphi 0, %s188
      %s191 = sphi 0, %s190
      %s205 = sphi 0, %s191
      %s209 = sphi 0, %s209
      %s211 = sphi 0, %s209
      %s212 = sphi 0, %s211
      %s226 = sphi 0, %s212
      %s232 = sphi 0, %s234
      %s235 = sphi 0, %s232
      %s236 = sphi 0, %s235
      %s252 = sphi 0, %s236
      %s258 = sphi 0, %s260
      %s261 = sphi 0, %s258
      %s262 = sphi 0, %s261
      %s278 = sphi 0, %s262
    $region4: #{tpu_custom_call.1} parent=1 // loop_header_branch
      %26 = sbr.rel (%p24) target = $region8
    $region5: #{tpu_custom_call.1} parent=1 // loop_body
      %s28 = ssub.s32 %s23, 1
      %s29 = ssub.s32 %s23, 2
      %s30 = sadd.s32 %s23, 1
      %s31 = ssub.s32 %s23, %s30
      %p32 = scmp.eq.s32.totalorder %s31, 0
      %s34 = sadd.s32 %s33, 1
      %s35 = scalar_select %p32, %s33, %s34
      %p38 = pneg %p32
      %p39 = scmp.eq.s32.totalorder %s23, 1
      %p40 = por %p38, %p39
      %p41 = scmp.ne.s32.totalorder %s33, %s36
      %p42 = scmp.eq.s32.totalorder %s23, 0
      %p43 = por %p41, %p42
      %p44 = scmp.ne.s32.totalorder %s33, %s36
      %p45 = scmp.eq.s32.totalorder %s28, 1
      %p46 = por %p44, %p45
      %p47 = scmp.ne.s32.totalorder %s36, %s37
      %p48 = scmp.eq.s32.totalorder %s28, 0
      %p49 = por %p47, %p48
      %p50 = scmp.ne.s32.totalorder %s36, %s37
      %p51 = scmp.eq.s32.totalorder %s29, 1
      %p52 = por %p50, %p51
      %p54 = scmp.ne.s32.totalorder %s37, %s53
      %p55 = scmp.eq.s32.totalorder %s29, 0
      %p56 = por %p54, %p55
      %s57 = ssub.s32 %s23, %s30
      %p58 = scmp.eq.s32.totalorder %s57, 0
      %s60 = sadd.s32 %s59, 1
      %s61 = scalar_select %p58, %s59, %s60
      %p64 = pneg %p58
      %p65 = scmp.eq.s32.totalorder %s23, 1
      %p66 = por %p64, %p65
      %p67 = scmp.ne.s32.totalorder %s59, %s62
      %p68 = scmp.eq.s32.totalorder %s23, 0
      %p69 = por %p67, %p68
      %p70 = scmp.ne.s32.totalorder %s59, %s62
      %p71 = scmp.eq.s32.totalorder %s28, 1
      %p72 = por %p70, %p71
      %p73 = scmp.ne.s32.totalorder %s62, %s63
      %p74 = scmp.eq.s32.totalorder %s28, 0
      %p75 = por %p73, %p74
      %p76 = scmp.ne.s32.totalorder %s62, %s63
      %p77 = scmp.eq.s32.totalorder %s29, 1
      %p78 = por %p76, %p77
      %p80 = scmp.ne.s32.totalorder %s63, %s79
      %p81 = scmp.eq.s32.totalorder %s29, 0
      %p82 = por %p80, %p81
      %s84 = sadd.s32 %s83, 1
      %p87 = scmp.eq.s32.totalorder %s23, 1
      %p88 = scmp.ne.s32.totalorder %s83, %s85
      %p89 = scmp.eq.s32.totalorder %s23, 0
      %p90 = por %p88, %p89
      %p91 = scmp.ne.s32.totalorder %s83, %s85
      %p92 = scmp.eq.s32.totalorder %s28, 1
      %p93 = por %p91, %p92
      %p94 = scmp.ne.s32.totalorder %s85, %s86
      %p95 = scmp.eq.s32.totalorder %s28, 0
      %p96 = por %p94, %p95
      %p97 = scmp.ne.s32.totalorder %s85, %s86
      %p98 = scmp.eq.s32.totalorder %s29, 1
      %p99 = por %p97, %p98
      %p101 = scmp.ne.s32.totalorder %s86, %s100
      %p102 = scmp.eq.s32.totalorder %s29, 0
      %p103 = por %p101, %p102
      %s105 = sadd.s32 %s104, 1
      %p108 = scmp.eq.s32.totalorder %s23, 1
      %p109 = scmp.ne.s32.totalorder %s104, %s106
      %p110 = scmp.eq.s32.totalorder %s23, 0
      %p111 = por %p109, %p110
      %p112 = scmp.ne.s32.totalorder %s104, %s106
      %p113 = scmp.eq.s32.totalorder %s28, 1
      %p114 = por %p112, %p113
      %p115 = scmp.ne.s32.totalorder %s106, %s107
      %p116 = scmp.eq.s32.totalorder %s28, 0
      %p117 = por %p115, %p116
      %p118 = scmp.ne.s32.totalorder %s106, %s107
      %p119 = scmp.eq.s32.totalorder %s29, 1
      %p120 = por %p118, %p119
      %p122 = scmp.ne.s32.totalorder %s107, %s121
      %p123 = scmp.eq.s32.totalorder %s29, 0
      %p124 = por %p122, %p123
      %s126 = sadd.s32 %s125, 1
      %p129 = scmp.eq.s32.totalorder %s23, 1
      %p130 = scmp.ne.s32.totalorder %s125, %s127
      %p131 = scmp.eq.s32.totalorder %s23, 0
      %p132 = por %p130, %p131
      %p133 = scmp.ne.s32.totalorder %s125, %s127
      %p134 = scmp.eq.s32.totalorder %s28, 1
      %p135 = por %p133, %p134
      %p136 = scmp.ne.s32.totalorder %s127, %s128
      %p137 = scmp.eq.s32.totalorder %s28, 0
      %p138 = por %p136, %p137
      %p139 = scmp.ne.s32.totalorder %s127, %s128
      %p140 = scmp.eq.s32.totalorder %s29, 1
      %p141 = por %p139, %p140
      %p143 = scmp.ne.s32.totalorder %s128, %s142
      %p144 = scmp.eq.s32.totalorder %s29, 0
      %p145 = por %p143, %p144
      %s147 = sadd.s32 %s146, 1
      %p150 = scmp.eq.s32.totalorder %s23, 1
      %p151 = scmp.ne.s32.totalorder %s146, %s148
      %p152 = scmp.eq.s32.totalorder %s23, 0
      %p153 = por %p151, %p152
      %p154 = scmp.ne.s32.totalorder %s146, %s148
      %p155 = scmp.eq.s32.totalorder %s28, 1
      %p156 = por %p154, %p155
      %p157 = scmp.ne.s32.totalorder %s148, %s149
      %p158 = scmp.eq.s32.totalorder %s28, 0
      %p159 = por %p157, %p158
      %p160 = scmp.ne.s32.totalorder %s148, %s149
      %p161 = scmp.eq.s32.totalorder %s29, 1
      %p162 = por %p160, %p161
      %p164 = scmp.ne.s32.totalorder %s149, %s163
      %p165 = scmp.eq.s32.totalorder %s29, 0
      %p166 = por %p164, %p165
      %s168 = sadd.s32 %s167, 1
      %p171 = scmp.eq.s32.totalorder %s23, 1
      %p172 = scmp.ne.s32.totalorder %s167, %s169
      %p173 = scmp.eq.s32.totalorder %s23, 0
      %p174 = por %p172, %p173
      %p175 = scmp.ne.s32.totalorder %s167, %s169
      %p176 = scmp.eq.s32.totalorder %s28, 1
      %p177 = por %p175, %p176
      %p178 = scmp.ne.s32.totalorder %s169, %s170
      %p179 = scmp.eq.s32.totalorder %s28, 0
      %p180 = por %p178, %p179
      %p181 = scmp.ne.s32.totalorder %s169, %s170
      %p182 = scmp.eq.s32.totalorder %s29, 1
      %p183 = por %p181, %p182
      %p185 = scmp.ne.s32.totalorder %s170, %s184
      %p186 = scmp.eq.s32.totalorder %s29, 0
      %p187 = por %p185, %p186
      %s189 = sadd.s32 %s188, 1
      %p192 = scmp.eq.s32.totalorder %s23, 1
      %p193 = scmp.ne.s32.totalorder %s188, %s190
      %p194 = scmp.eq.s32.totalorder %s23, 0
      %p195 = por %p193, %p194
      %p196 = scmp.ne.s32.totalorder %s188, %s190
      %p197 = scmp.eq.s32.totalorder %s28, 1
      %p198 = por %p196, %p197
      %p199 = scmp.ne.s32.totalorder %s190, %s191
      %p200 = scmp.eq.s32.totalorder %s28, 0
      %p201 = por %p199, %p200
      %p202 = scmp.ne.s32.totalorder %s190, %s191
      %p203 = scmp.eq.s32.totalorder %s29, 1
      %p204 = por %p202, %p203
      %p206 = scmp.ne.s32.totalorder %s191, %s205
      %p207 = scmp.eq.s32.totalorder %s29, 0
      %p208 = por %p206, %p207
      %s210 = sadd.s32 %s209, 1
      %p213 = scmp.eq.s32.totalorder %s23, 1
      %p214 = scmp.ne.s32.totalorder %s209, %s211
      %p215 = scmp.eq.s32.totalorder %s23, 0
      %p216 = por %p214, %p215
      %p217 = scmp.ne.s32.totalorder %s209, %s211
      %p218 = scmp.eq.s32.totalorder %s28, 1
      %p219 = por %p217, %p218
      %p220 = scmp.ne.s32.totalorder %s211, %s212
      %p221 = scmp.eq.s32.totalorder %s28, 0
      %p222 = por %p220, %p221
      %p223 = scmp.ne.s32.totalorder %s211, %s212
      %p224 = scmp.eq.s32.totalorder %s29, 1
      %p225 = por %p223, %p224
      %p227 = scmp.ne.s32.totalorder %s212, %s226
      %p228 = scmp.eq.s32.totalorder %s29, 0
      %p229 = por %p227, %p228
      %s230 = ssub.s32 %s23, %s30
      %p231 = scmp.eq.s32.totalorder %s230, 0
      %s233 = sadd.s32 %s232, 1
      %s234 = scalar_select %p231, %s232, %s233
      %p237 = pneg %p231
      %p238 = scmp.eq.s32.totalorder %s23, 1
      %p239 = por %p237, %p238
      %p240 = scmp.ne.s32.totalorder %s232, %s235
      %p241 = scmp.eq.s32.totalorder %s23, 0
      %p242 = por %p240, %p241
      %p243 = scmp.ne.s32.totalorder %s232, %s235
      %p244 = scmp.eq.s32.totalorder %s28, 1
      %p245 = por %p243, %p244
      %p246 = scmp.ne.s32.totalorder %s235, %s236
      %p247 = scmp.eq.s32.totalorder %s28, 0
      %p248 = por %p246, %p247
      %p249 = scmp.ne.s32.totalorder %s235, %s236
      %p250 = scmp.eq.s32.totalorder %s29, 1
      %p251 = por %p249, %p250
      %p253 = scmp.ne.s32.totalorder %s236, %s252
      %p254 = scmp.eq.s32.totalorder %s29, 0
      %p255 = por %p253, %p254
      %s256 = ssub.s32 %s23, %s30
      %p257 = scmp.eq.s32.totalorder %s256, 0
      %s259 = sadd.s32 %s258, 1
      %s260 = scalar_select %p257, %s258, %s259
      %p263 = pneg %p257
      %p264 = scmp.eq.s32.totalorder %s23, 1
      %p265 = por %p263, %p264
      %p266 = scmp.ne.s32.totalorder %s258, %s261
      %p267 = scmp.eq.s32.totalorder %s23, 0
      %p268 = por %p266, %p267
      %p269 = scmp.ne.s32.totalorder %s258, %s261
      %p270 = scmp.eq.s32.totalorder %s28, 1
      %p271 = por %p269, %p270
      %p272 = scmp.ne.s32.totalorder %s261, %s262
      %p273 = scmp.eq.s32.totalorder %s28, 0
      %p274 = por %p272, %p273
      %p275 = scmp.ne.s32.totalorder %s261, %s262
      %p276 = scmp.eq.s32.totalorder %s29, 1
      %p277 = por %p275, %p276
      %p279 = scmp.ne.s32.totalorder %s262, %s278
      %p280 = scmp.eq.s32.totalorder %s29, 0
      %p281 = por %p279, %p280
      %p282 = scmp.le.s32.totalorder 1, %s23
      %p283 = scmp.lt.s32.totalorder %s23, 3
      %p284 = pnand %p282, %p283
      %p285 = pneg %p284
      // Predicated region
      $region9: #{tpu_custom_call.1} parent=5 // pred_check
        _
      $region10: #{tpu_custom_call.1} parent=5 // pred_check_branch
        %287 = sbr.rel (%p284) target = $region12
      $region11: #{tpu_custom_call.1} parent=5 // pred_region
        %s288 = ssub.s32 %s23, 1
        // Predicated region
        $region13: #{tpu_custom_call.1} parent=11 // pred_check
          %p289 = pneg %p96
        $region14: #{tpu_custom_call.1} parent=11 // pred_check_branch
          %291 = sbr.rel (%p289) target = $region16
        $region15: #{tpu_custom_call.1} parent=11 // pred_region
          _
        $region16: #{tpu_custom_call.1} parent=11 // pred_fallthru
          _
        // Predicated region
        $region17: #{tpu_custom_call.1} parent=11 // pred_check
          %p292 = pneg %p117
        $region18: #{tpu_custom_call.1} parent=11 // pred_check_branch
          %294 = sbr.rel (%p292) target = $region20
        $region19: #{tpu_custom_call.1} parent=11 // pred_region
          _
        $region20: #{tpu_custom_call.1} parent=11 // pred_fallthru
          _
        // Predicated region
        $region21: #{tpu_custom_call.1} parent=11 // pred_check
          %p295 = pneg %p138
        $region22: #{tpu_custom_call.1} parent=11 // pred_check_branch
          %297 = sbr.rel (%p295) target = $region24
        $region23: #{tpu_custom_call.1} parent=11 // pred_region
          _
        $region24: #{tpu_custom_call.1} parent=11 // pred_fallthru
          _
        // Predicated region
        $region25: #{tpu_custom_call.1} parent=11 // pred_check
          %p298 = pneg %p159
        $region26: #{tpu_custom_call.1} parent=11 // pred_check_branch
          %300 = sbr.rel (%p298) target = $region28
        $region27: #{tpu_custom_call.1} parent=11 // pred_region
          _
        $region28: #{tpu_custom_call.1} parent=11 // pred_fallthru
          _
        // Predicated region
        $region29: #{tpu_custom_call.1} parent=11 // pred_check
          %p301 = pneg %p180
        $region30: #{tpu_custom_call.1} parent=11 // pred_check_branch
          %303 = sbr.rel (%p301) target = $region32
        $region31: #{tpu_custom_call.1} parent=11 // pred_region
          _
        $region32: #{tpu_custom_call.1} parent=11 // pred_fallthru
          _
        // Predicated region
        $region33: #{tpu_custom_call.1} parent=11 // pred_check
          %p304 = pneg %p201
        $region34: #{tpu_custom_call.1} parent=11 // pred_check_branch
          %306 = sbr.rel (%p304) target = $region36
        $region35: #{tpu_custom_call.1} parent=11 // pred_region
          _
        $region36: #{tpu_custom_call.1} parent=11 // pred_fallthru
          _
        // Predicated region
        $region37: #{tpu_custom_call.1} parent=11 // pred_check
          %p307 = pneg %p222
        $region38: #{tpu_custom_call.1} parent=11 // pred_check_branch
          %309 = sbr.rel (%p307) target = $region40
        $region39: #{tpu_custom_call.1} parent=11 // pred_region
          _
        $region40: #{tpu_custom_call.1} parent=11 // pred_fallthru
          _
      $region12: #{tpu_custom_call.1} parent=5 // pred_fallthru
        _
      %p310 = scmp.lt.s32.totalorder %s23, 2
      // Predicated region
      $region41: #{tpu_custom_call.1} parent=5 // pred_check
        %p311 = pneg %p310
      $region42: #{tpu_custom_call.1} parent=5 // pred_check_branch
        %313 = sbr.rel (%p311) target = $region44
      $region43: #{tpu_custom_call.1} parent=5 // pred_region
        // Predicated region
        $region45: #{tpu_custom_call.1} parent=43 // pred_check
          %p314 = pneg %p43
        $region46: #{tpu_custom_call.1} parent=43 // pred_check_branch
          %316 = sbr.rel (%p314) target = $region48
        $region47: #{tpu_custom_call.1} parent=43 // pred_region
          %p317 = scmp.lt.s32.totalorder %s23, 1
          %s318 = scalar_select %p317, %s23, 1
          %s319 = smul.addr %s318, 8
          %s320 = scalar_lea.vmem %s0, %s319
        $region48: #{tpu_custom_call.1} parent=43 // pred_fallthru
          _
        // Predicated region
        $region49: #{tpu_custom_call.1} parent=43 // pred_check
          %p321 = pneg %p69
        $region50: #{tpu_custom_call.1} parent=43 // pred_check_branch
          %323 = sbr.rel (%p321) target = $region52
        $region51: #{tpu_custom_call.1} parent=43 // pred_region
          %p324 = scmp.lt.s32.totalorder %s23, 1
          %s325 = scalar_select %p324, %s23, 1
          %s326 = smul.addr %s325, 2
          %s327 = scalar_lea.vmem %s1, %s326
        $region52: #{tpu_custom_call.1} parent=43 // pred_fallthru
          _
      $region44: #{tpu_custom_call.1} parent=5 // pred_fallthru
        _
      %p328 = scmp.le.s32.totalorder 1, %s23
      %p329 = scmp.lt.s32.totalorder %s23, 3
      %p330 = pnand %p328, %p329
      %p331 = pneg %p330
      // Predicated region
      $region53: #{tpu_custom_call.1} parent=5 // pred_check
        _
      $region54: #{tpu_custom_call.1} parent=5 // pred_check_branch
        %333 = sbr.rel (%p330) target = $region56
      $region55: #{tpu_custom_call.1} parent=5 // pred_region
        %s334 = ssub.s32 %s23, 1
        %p335 = scmp.lt.s32.totalorder %s28, 1
        %s336 = scalar_select %p335, %s28, 1
        %s337 = smul.addr %s336, 8
        %s338 = scalar_lea.vmem %s0, %s337
        %p339 = pneg %p49
        %p340 = pneg %p46
        %p341 = scmp.lt.s32.totalorder %s28, 1
        %s342 = scalar_select %p341, %s28, 1
        %s343 = smul.addr %s342, 2
        %s344 = scalar_lea.vmem %s1, %s343
        %p345 = pneg %p75
        %p346 = pneg %p72
        %p347 = pneg %p96
        %p348 = pneg %p93
        %p349 = pneg %p117
        %p350 = pneg %p114
        %p351 = pneg %p138
        %p352 = pneg %p135
        %p353 = pneg %p159
        %p354 = pneg %p156
        %p355 = pneg %p180
        %p356 = pneg %p177
        %p357 = pneg %p201
        %p358 = pneg %p198
        %p359 = pneg %p222
        %p360 = pneg %p219
        %p361 = pneg %p248
        %p362 = pneg %p245
        %s363 = sand.u32 %s235, 1
        %s364 = scalar_lea.sflag [#allocation8], %s363
        %s365 = sand.u32 %s235, 1
        %s366 = smul.addr %s365, 8
        %s367 = scalar_lea.vmem [#allocation7], %s366
        %p368 = pneg %p274
        %p369 = pneg %p271
        %s370 = sand.u32 %s261, 1
        %s371 = scalar_lea.sflag [#allocation10], %s370
        %s372 = sand.u32 %s261, 1
        %s373 = smul.addr %s372, 16
        %s374 = scalar_lea.vmem [#allocation9], %s373
        %p375 = scmp.lt.s32.totalorder %s28, 1
        %s376 = scalar_select %p375, %s28, 1
        %s377 = smul.addr %s376, 8
        %s378 = scalar_lea.vmem %s0, %s377
        %p379 = scmp.lt.s32.totalorder %s28, 1
        %s380 = scalar_select %p379, %s28, 1
        %s381 = smul.addr %s380, 2
        %s382 = scalar_lea.vmem %s1, %s381
        %v386 = vld [vmem:[%s378] sm:$0xff]
        %v387 = vpack.c.bf16 %v386, %v386
        %v388 = vld [vmem:[%s2] sm:$0xff]
        %v389 = vld [vmem:[%s2 + $0x8] sm:$0xff]
        %v390 = vld [vmem:[%s2 + $0x10] sm:$0xff]
        %v391 = vld [vmem:[%s2 + $0x18] sm:$0xff]
        %v392 = vld [vmem:[%s2 + $0x20] sm:$0xff]
        %v393 = vld [vmem:[%s2 + $0x28] sm:$0xff]
        %v394 = vld [vmem:[%s2 + $0x30] sm:$0xff]
        %v395 = vld [vmem:[%s2 + $0x38] sm:$0xff]
        %v396 = vld [vmem:[%s3] sm:$0x3]
        %v398 = vlaneseq
        %v399 = vshrl.u32 %v398, 7
        %v400 = vsub.s32 0, %v399
        %v401 = vrot.slane %v396, %v400
        %v402 = vlaneseq
        %v403 = vshrl.u32 %v402, 7
        %v404 = vsub.s32 1, %v403
        %v405 = vrot.slane %v396, %v404
        %v416 = vunpack.c.l.b16 %v388
        %v417 = vunpack.c.h.b16 %v388
        %v418 = vunpack.c.l.b16 %v389
        %v419 = vunpack.c.h.b16 %v389
        %v420 = vunpack.c.l.b16 %v390
        %v421 = vunpack.c.h.b16 %v390
        %v422 = vunpack.c.l.b16 %v391
        %v423 = vunpack.c.h.b16 %v391
        %v424 = vunpack.c.l.b16 %v392
        %v425 = vunpack.c.h.b16 %v392
        %v426 = vunpack.c.l.b16 %v393
        %v427 = vunpack.c.h.b16 %v393
        %v428 = vunpack.c.l.b16 %v394
        %v429 = vunpack.c.h.b16 %v394
        %v430 = vunpack.c.l.b16 %v395
        %v431 = vunpack.c.h.b16 %v395
        %v432 = vpack.c.b16 %v418, %v416
        %v433 = vpack.c.b16 %v419, %v417
        %v434 = vpack.c.b16 %v422, %v420
        %v435 = vpack.c.b16 %v423, %v421
        %v436 = vpack.c.b16 %v426, %v424
        %v437 = vpack.c.b16 %v427, %v425
        %v438 = vpack.c.b16 %v430, %v428
        %v439 = vpack.c.b16 %v431, %v429
        %vm448 = vcmask 523264
        %v450 = vsel %vm448, %v387, 0
        %452 = vmatprep.subr.bf16.mxu0 %v433
        %453 = vmatpush1.bf16.msra.mxu0 %v432
        %454 = vmatprep.subr.bf16.mxu0 %v435
        %455 = vmatpush1.bf16.msra.mxu0 %v434
        %456 = vmatprep.subr.bf16.mxu0 %v437
        %457 = vmatpush1.bf16.msra.mxu0 %v436
        %458 = vmatprep.subr.bf16.mxu0 %v439
        %459 = vmatpush1.bf16.msra.mxu0 %v438
        %460 = vmatprep.subr.bf16.mxu0 0
        %461 = vmatpush1.bf16.msra.mxu0 0
        %462 = vmatprep.subr.bf16.mxu0 0
        %463 = vmatpush1.bf16.msra.mxu0 0
        %464 = vmatprep.subr.bf16.mxu0 0
        %465 = vmatpush1.bf16.msra.mxu0 0
        %466 = vmatprep.subr.bf16.mxu0 0
        %467 = vmatpush1.bf16.msra.mxu0 0
        %468 = vmatprep.subr.bf16.mxu0 0
        %469 = vmatpush1.bf16.msra.mxu0 0
        %470 = vmatprep.subr.bf16.mxu0 0
        %471 = vmatpush1.bf16.msra.mxu0 0
        %472 = vmatprep.subr.bf16.mxu0 0
        %473 = vmatpush1.bf16.msra.mxu0 0
        %474 = vmatprep.subr.bf16.mxu0 0
        %475 = vmatpush1.bf16.msra.mxu0 0
        %476 = vmatprep.subr.bf16.mxu0 0
        %477 = vmatpush1.bf16.msra.mxu0 0
        %478 = vmatprep.subr.bf16.mxu0 0
        %479 = vmatpush1.bf16.msra.mxu0 0
        %480 = vmatprep.subr.bf16.mxu0 0
        %481 = vmatpush1.bf16.msra.mxu0 0
        %482 = vmatprep.subr.bf16.mxu0 0
        %483 = vmatpush1.bf16.msra.mxu0 0
        %484 = vmatprep.mubr.bf16.mxu0 0
        %485 = vmatmul.mubr.bf16.gmra.mrb[0].mxu0 %v450
        %v486 = vpop.f32.mrb[0].mxu0
        %v487 = vadd.f32 %v401, %v486
        %v488 = vpop.f32.mrb[0].mxu0
        %v489 = vadd.f32 %v405, %v488
        %v490 = vpop.f32.mrb[0].mxu0
        %v491 = vpop.f32.mrb[0].mxu0
        %492 = vdwg.mxu0
        %v493 = vmul.f32 %v487, 0.25
        %v494 = vpack.c.bf16 %v493, %v493
        %vm495 = vcmask 125952
        %496 = vst.msk [vmem:[#allocation2] sm:$0xf] %vm495, %v494
        %v497 = vpack.c.bf16 %v487, %v487
        %v499 = vunpack.c.l.b16 %v497
        %v500 = vpack.c.b16 %v499, %v499
        %501 = vrot.lane.b32.xlu0 %v500, 64
        %v502 = vpop.permute.xlu0 %501
        %504 = vst.msk [vmem:[#allocation3] sm:$0xf] %vm495, %v502
        %v505 = vpack.c.bf16 %v489, %v489
        %506 = vst.msk [vmem:[#allocation4] sm:$0xf] %vm495, %v505
        %v508 = vunpack.c.l.b16 %v494
        %v509 = vpack.c.b16 %v508, %v508
        %510 = vrot.lane.b32.xlu0 %v509, 112
        %v511 = vpop.permute.xlu0 %510
        %s513 = scalar_lea.vmem [#allocation2], 4
        %514 = vst.msk [vmem:[%s513] sm:$0xf] %vm495, %v511
        %515 = vrot.lane.b32.xlu0 %v500, 48
        %v516 = vpop.permute.xlu0 %515
        %s518 = scalar_lea.vmem [#allocation3], 4
        %519 = vst.msk [vmem:[%s518] sm:$0xf] %vm495, %v516
        %v521 = vunpack.c.l.b16 %v505
        %v522 = vpack.c.b16 %v521, %v521
        %523 = vrot.lane.b32.xlu0 %v522, 112
        %v524 = vpop.permute.xlu0 %523
        %s526 = scalar_lea.vmem [#allocation4], 4
        %527 = vst.msk [vmem:[%s526] sm:$0xf] %vm495, %v524
        %528 = vrot.lane.b32.xlu0 %v509, 96
        %v529 = vpop.permute.xlu0 %528
        %s531 = scalar_lea.vmem [#allocation2], 8
        %532 = vst.msk [vmem:[%s531] sm:$0xf] %vm495, %v529
        %533 = vrot.lane.b32.xlu0 %v500, 32
        %v534 = vpop.permute.xlu0 %533
        %s536 = scalar_lea.vmem [#allocation3], 8
        %537 = vst.msk [vmem:[%s536] sm:$0xf] %vm495, %v534
        %538 = vrot.lane.b32.xlu0 %v522, 96
        %v539 = vpop.permute.xlu0 %538
        %s541 = scalar_lea.vmem [#allocation4], 8
        %542 = vst.msk [vmem:[%s541] sm:$0xf] %vm495, %v539
        %543 = vrot.lane.b32.xlu0 %v509, 80
        %v544 = vpop.permute.xlu0 %543
        %s546 = scalar_lea.vmem [#allocation2], 12
        %547 = vst.msk [vmem:[%s546] sm:$0xf] %vm495, %v544
        %548 = vrot.lane.b32.xlu0 %v500, 16
        %v549 = vpop.permute.xlu0 %548
        %s551 = scalar_lea.vmem [#allocation3], 12
        %552 = vst.msk [vmem:[%s551] sm:$0xf] %vm495, %v549
        %553 = vrot.lane.b32.xlu0 %v522, 80
        %v554 = vpop.permute.xlu0 %553
        %s556 = scalar_lea.vmem [#allocation4], 12
        %557 = vst.msk [vmem:[%s556] sm:$0xf] %vm495, %v554
        %v558 = vld [vmem:[%s382] sm:$0x3]
        %vm559 = vnez %v558
        loop: start=0, step=1, limit=4
        $region57: #{tpu_custom_call.1} parent=55 // loop_pre_header
          _
        $region58: #{tpu_custom_call.1} parent=55 // loop_header
          %s561 = sphi 0, %s565
          %p562 = scmp.ge.s32.totalorder %s561, 4
        $region59: #{tpu_custom_call.1} parent=55 // loop_header_branch
          %564 = sbr.rel (%p562) target = $region63
        $region60: #{tpu_custom_call.1} parent=55 // loop_body
          %s566 = smul.addr %s561, 4
          %s567 = scalar_lea.vmem [#allocation2], %s566
          %v568 = vld [vmem:[%s567] sm:$0xf]
          %s569 = smul.addr %s561, 4
          %s570 = scalar_lea.vmem [#allocation3], %s569
          %v571 = vld [vmem:[%s570] sm:$0xf]
          %s572 = smul.addr %s561, 4
          %s573 = scalar_lea.vmem [#allocation4], %s572
          %v574 = vld [vmem:[%s573] sm:$0xf]
          %vm575 = vcmask 130048
          %v577 = vsel %vm575, %v568, 0
          %v580 = vsel %vm575, %v571, 0
          %582 = vmatprep.subr.bf16.mxu0 0
          %583 = vmatpush1.bf16.xpose.msra.mxu0 %v580
          %584 = vmatprep.subr.bf16.mxu0 0
          %585 = vmatpush1.bf16.xpose.msra.mxu0 0
          %586 = vmatprep.subr.bf16.mxu0 0
          %587 = vmatpush1.bf16.xpose.msra.mxu0 0
          %588 = vmatprep.subr.bf16.mxu0 0
          %589 = vmatpush1.bf16.xpose.msra.mxu0 0
          %590 = vmatprep.subr.bf16.mxu0 0
          %591 = vmatpush1.bf16.xpose.msra.mxu0 0
          %592 = vmatprep.subr.bf16.mxu0 0
          %593 = vmatpush1.bf16.xpose.msra.mxu0 0
          %594 = vmatprep.subr.bf16.mxu0 0
          %595 = vmatpush1.bf16.xpose.msra.mxu0 0
          %596 = vmatprep.subr.bf16.mxu0 0
          %597 = vmatpush1.bf16.xpose.msra.mxu0 0
          %598 = vmatprep.subr.bf16.mxu0 0
          %599 = vmatpush1.bf16.xpose.msra.mxu0 0
          %600 = vmatprep.subr.bf16.mxu0 0
          %601 = vmatpush1.bf16.xpose.msra.mxu0 0
          %602 = vmatprep.subr.bf16.mxu0 0
          %603 = vmatpush1.bf16.xpose.msra.mxu0 0
          %604 = vmatprep.subr.bf16.mxu0 0
          %605 = vmatpush1.bf16.xpose.msra.mxu0 0
          %606 = vmatprep.subr.bf16.mxu0 0
          %607 = vmatpush1.bf16.xpose.msra.mxu0 0
          %608 = vmatprep.subr.bf16.mxu0 0
          %609 = vmatpush1.bf16.xpose.msra.mxu0 0
          %610 = vmatprep.subr.bf16.mxu0 0
          %611 = vmatpush1.bf16.xpose.msra.mxu0 0
          %612 = vmatprep.subr.bf16.mxu0 0
          %613 = vmatpush1.bf16.xpose.msra.mxu0 0
          %614 = vmatprep.mubr.bf16.mxu0 0
          %615 = vmatmul.mubr.bf16.gmra.mrb[0].mxu0 %v577
          %v616 = vpop.f32.mrb[0].mxu0
          %v617 = vadd.f32 0.0, %v616
          %v618 = vpop.f32.mrb[0].mxu0
          %v619 = vpop.f32.mrb[0].mxu0
          %v620 = vpop.f32.mrb[0].mxu0
          %621 = vdwg.mxu0
          %v622 = vsel %vm559, 16843009, 0
          %v623 = vunpack.c.0.s8 %v622
          %vm624 = vcmp.ne.s32.totalorder %v623, 0
          %v625 = vsel %vm624, -1e+09, %v617
          %vm626 = vcmask 64512
          %v627 = vsel %vm626, %v625, -inf
          %628 = vmax.xlane.f32.xlu0 %v627
          %v629 = vpop.xlane.xlu0 %628
          %v630 = vsub.f32 %v625, %v629
          %v631 = vmul.f32 %v630, 1.442695
          %v632 = vpow.pop %v631
          %v633 = vsel %vm626, %v632, 0.0
          %634 = vadd.xlane.f32.xlu0 %v633
          %v635 = vpop.xlane.xlu0 %634
          %v636 = vrcp.pop %v635
          %v637 = vmul.f32 %v632, %v636
          %v638 = vpack.c.bf16 %v637, %v637
          %s639 = smul.addr %s561, 4
          %s640 = scalar_lea.vmem %s374, %s639 [#allocation9]
          %vm641 = vcmask 60416
          %642 = vst.msk [vmem:[%s640] sm:$0xf] %vm641, %v638
          %v644 = vsel %vm626, %v638, 0
          %vm646 = vcmask 1043456
          %v648 = vsel %vm646, %v574, 0
          %650 = vmatprep.subr.bf16.mxu0 0
          %651 = vmatpush1.bf16.msra.mxu0 %v648
          %652 = vmatprep.subr.bf16.mxu0 0
          %653 = vmatpush1.bf16.msra.mxu0 0
          %654 = vmatprep.subr.bf16.mxu0 0
          %655 = vmatpush1.bf16.msra.mxu0 0
          %656 = vmatprep.subr.bf16.mxu0 0
          %657 = vmatpush1.bf16.msra.mxu0 0
          %658 = vmatprep.subr.bf16.mxu0 0
          %659 = vmatpush1.bf16.msra.mxu0 0
          %660 = vmatprep.subr.bf16.mxu0 0
          %661 = vmatpush1.bf16.msra.mxu0 0
          %662 = vmatprep.subr.bf16.mxu0 0
          %663 = vmatpush1.bf16.msra.mxu0 0
          %664 = vmatprep.subr.bf16.mxu0 0
          %665 = vmatpush1.bf16.msra.mxu0 0
          %666 = vmatprep.subr.bf16.mxu0 0
          %667 = vmatpush1.bf16.msra.mxu0 0
          %668 = vmatprep.subr.bf16.mxu0 0
          %669 = vmatpush1.bf16.msra.mxu0 0
          %670 = vmatprep.subr.bf16.mxu0 0
          %671 = vmatpush1.bf16.msra.mxu0 0
          %672 = vmatprep.subr.bf16.mxu0 0
          %673 = vmatpush1.bf16.msra.mxu0 0
          %674 = vmatprep.subr.bf16.mxu0 0
          %675 = vmatpush1.bf16.msra.mxu0 0
          %676 = vmatprep.subr.bf16.mxu0 0
          %677 = vmatpush1.bf16.msra.mxu0 0
          %678 = vmatprep.subr.bf16.mxu0 0
          %679 = vmatpush1.bf16.msra.mxu0 0
          %680 = vmatprep.subr.bf16.mxu0 0
          %681 = vmatpush1.bf16.msra.mxu0 0
          %682 = vmatprep.mubr.bf16.mxu0 0
          %683 = vmatmul.mubr.bf16.gmra.mrb[0].mxu0 %v644
          %v684 = vpop.f32.mrb[0].mxu0
          %v685 = vadd.f32 0.0, %v684
          %v686 = vpop.f32.mrb[0].mxu0
          %v687 = vpop.f32.mrb[0].mxu0
          %v688 = vpop.f32.mrb[0].mxu0
          %689 = vdwg.mxu0
          %v690 = vpack.c.bf16 %v685, %v685
          %s691 = smul.addr %s561, 4
          %s692 = scalar_lea.vmem [#allocation5], %s691
          %693 = vst.msk [vmem:[%s692] sm:$0xf] %vm495, %v690
        $region61: #{tpu_custom_call.1} parent=55 // loop_footer
          %s565 = sadd.s32 1, %s561
        $region62: #{tpu_custom_call.1} parent=55 // loop_footer_branch
          %560 = sbr.rel target = $region58
        $region63: #{tpu_custom_call.1} parent=55 // loop_exit
          _
        %v694 = vld [vmem:[#allocation5] sm:$0xf]
        %695 = vst.msk [vmem:[#allocation6] sm:$0xf] %vm495, %v694
        %s696 = scalar_lea.vmem [#allocation5], 4
        %v697 = vld [vmem:[%s696] sm:$0xf]
        %699 = vrot.lane.b32.xlu0 %v697, 16
        %v700 = vpop.permute.xlu0 %699
        %vm702 = vcmask 257152
        %703 = vst.msk [vmem:[#allocation6] sm:$0xf] %vm702, %v700
        %s704 = scalar_lea.vmem [#allocation5], 8
        %v705 = vld [vmem:[%s704] sm:$0xf]
        %707 = vrot.lane.b32.xlu0 %v705, 32
        %v708 = vpop.permute.xlu0 %707
        %vm710 = vcmask 388352
        %711 = vst.msk [vmem:[#allocation6] sm:$0xf] %vm710, %v708
        %s712 = scalar_lea.vmem [#allocation5], 12
        %v713 = vld [vmem:[%s712] sm:$0xf]
        %715 = vrot.lane.b32.xlu0 %v713, 48
        %v716 = vpop.permute.xlu0 %715
        %vm718 = vcmask 519552
        %719 = vst.msk [vmem:[#allocation6] sm:$0xf] %vm718, %v716
        %v720 = vld [vmem:[%s5] sm:$0x1]
        %v721 = vld [vmem:[%s5 + $0x1] sm:$0x1]
        %v722 = vld [vmem:[%s5 + $0x2] sm:$0x1]
        %v723 = vld [vmem:[%s5 + $0x3] sm:$0x1]
        %v724 = vld [vmem:[#allocation6] sm:$0xf]
        %v725 = vld [vmem:[%s4] sm:$0xf]
        %v726 = vld [vmem:[%s4 + $0x4] sm:$0xf]
        %v727 = vld [vmem:[%s4 + $0x8] sm:$0xf]
        %v728 = vld [vmem:[%s4 + $0xc] sm:$0xf]
        %v729 = vld [vmem:[%s4 + $0x10] sm:$0xf]
        %v730 = vld [vmem:[%s4 + $0x14] sm:$0xf]
        %v731 = vld [vmem:[%s4 + $0x18] sm:$0xf]
        %v732 = vld [vmem:[%s4 + $0x1c] sm:$0xf]
        %v733 = vlaneseq
        %v734 = vshrl.u32 %v733, 7
        %v735 = vsub.s32 0, %v734
        %v736 = vrot.slane %v720, %v735
        %v745 = vunpack.c.l.b16 %v725
        %v746 = vunpack.c.l.b16 %v726
        %v747 = vunpack.c.l.b16 %v727
        %v748 = vunpack.c.l.b16 %v728
        %v749 = vunpack.c.l.b16 %v729
        %v750 = vunpack.c.l.b16 %v730
        %v751 = vunpack.c.l.b16 %v731
        %v752 = vunpack.c.l.b16 %v732
        %v753 = vpack.c.b16 %v746, %v745
        %v754 = vpack.c.b16 %v748, %v747
        %v755 = vpack.c.b16 %v750, %v749
        %v756 = vpack.c.b16 %v752, %v751
        %v762 = vsel %vm448, %v724, 0
        %764 = vmatprep.subr.bf16.mxu0 0
        %765 = vmatpush1.bf16.msra.mxu0 %v753
        %766 = vmatprep.subr.bf16.mxu0 0
        %767 = vmatpush1.bf16.msra.mxu0 %v754
        %768 = vmatprep.subr.bf16.mxu0 0
        %769 = vmatpush1.bf16.msra.mxu0 %v755
        %770 = vmatprep.subr.bf16.mxu0 0
        %771 = vmatpush1.bf16.msra.mxu0 %v756
        %772 = vmatprep.subr.bf16.mxu0 0
        %773 = vmatpush1.bf16.msra.mxu0 0
        %774 = vmatprep.subr.bf16.mxu0 0
        %775 = vmatpush1.bf16.msra.mxu0 0
        %776 = vmatprep.subr.bf16.mxu0 0
        %777 = vmatpush1.bf16.msra.mxu0 0
        %778 = vmatprep.subr.bf16.mxu0 0
        %779 = vmatpush1.bf16.msra.mxu0 0
        %780 = vmatprep.subr.bf16.mxu0 0
        %781 = vmatpush1.bf16.msra.mxu0 0
        %782 = vmatprep.subr.bf16.mxu0 0
        %783 = vmatpush1.bf16.msra.mxu0 0
        %784 = vmatprep.subr.bf16.mxu0 0
        %785 = vmatpush1.bf16.msra.mxu0 0
        %786 = vmatprep.subr.bf16.mxu0 0
        %787 = vmatpush1.bf16.msra.mxu0 0
        %788 = vmatprep.subr.bf16.mxu0 0
        %789 = vmatpush1.bf16.msra.mxu0 0
        %790 = vmatprep.subr.bf16.mxu0 0
        %791 = vmatpush1.bf16.msra.mxu0 0
        %792 = vmatprep.subr.bf16.mxu0 0
        %793 = vmatpush1.bf16.msra.mxu0 0
        %794 = vmatprep.subr.bf16.mxu0 0
        %795 = vmatpush1.bf16.msra.mxu0 0
        %796 = vmatprep.mubr.bf16.mxu0 0
        %797 = vmatmul.mubr.bf16.gmra.mrb[0].mxu0 %v762
        %v798 = vpop.f32.mrb[0].mxu0
        %v799 = vadd.f32 %v736, %v798
        %v800 = vpop.f32.mrb[0].mxu0
        %v801 = vpop.f32.mrb[0].mxu0
        %v802 = vpop.f32.mrb[0].mxu0
        %803 = vdwg.mxu0
        %v804 = vadd.f32 %v799, %v386
        %v805 = vsel %vm448, %v804, 0.0
        %806 = vadd.xlane.f32.xlu0 %v805
        %v807 = vpop.xlane.xlu0 %806
        %v808 = vrcp.pop 64.0
        %v809 = vmul.f32 %v807, %v808
        %v810 = vsub.f32 %v804, %v809
        %v811 = vmul.f32 %v810, %v810
        %v812 = vsel %vm448, %v811, 0.0
        %813 = vadd.xlane.f32.xlu0 %v812
        %v814 = vpop.xlane.xlu0 %813
        %v815 = vmul.f32 %v814, %v808
        %v816 = vadd.f32 %v815, 1e-05
        %v817 = vrsqrt.pop %v816
        %v818 = vmul.f32 %v810, %v817
        %v819 = vlaneseq
        %v820 = vshrl.u32 %v819, 7
        %v821 = vsub.s32 0, %v820
        %v822 = vrot.slane %v721, %v821
        %v823 = vmul.f32 %v818, %v822
        %v824 = vlaneseq
        %v825 = vshrl.u32 %v824, 7
        %v826 = vsub.s32 0, %v825
        %v827 = vrot.slane %v722, %v826
        %v828 = vadd.f32 %v823, %v827
        %v829 = vpack.c.bf16 %v828, %v828
        %v830 = vld [vmem:[%s6] sm:$0xff]
        %v831 = vld [vmem:[%s6 + $0x8] sm:$0xff]
        %v832 = vld [vmem:[%s6 + $0x10] sm:$0xff]
        %v833 = vld [vmem:[%s6 + $0x18] sm:$0xff]
        %v834 = vld [vmem:[%s6 + $0x20] sm:$0xff]
        %v835 = vld [vmem:[%s6 + $0x28] sm:$0xff]
        %v836 = vld [vmem:[%s6 + $0x30] sm:$0xff]
        %v837 = vld [vmem:[%s6 + $0x38] sm:$0xff]
        %v838 = vld [vmem:[%s7] sm:$0x3]
        %v840 = vlaneseq
        %v841 = vshrl.u32 %v840, 7
        %v842 = vsub.s32 0, %v841
        %v843 = vrot.slane %v838, %v842
        %v844 = vlaneseq
        %v845 = vshrl.u32 %v844, 7
        %v846 = vsub.s32 1, %v845
        %v847 = vrot.slane %v838, %v846
        %v858 = vunpack.c.l.b16 %v830
        %v859 = vunpack.c.h.b16 %v830
        %v860 = vunpack.c.l.b16 %v831
        %v861 = vunpack.c.h.b16 %v831
        %v862 = vunpack.c.l.b16 %v832
        %v863 = vunpack.c.h.b16 %v832
        %v864 = vunpack.c.l.b16 %v833
        %v865 = vunpack.c.h.b16 %v833
        %v866 = vunpack.c.l.b16 %v834
        %v867 = vunpack.c.h.b16 %v834
        %v868 = vunpack.c.l.b16 %v835
        %v869 = vunpack.c.h.b16 %v835
        %v870 = vunpack.c.l.b16 %v836
        %v871 = vunpack.c.h.b16 %v836
        %v872 = vunpack.c.l.b16 %v837
        %v873 = vunpack.c.h.b16 %v837
        %v874 = vpack.c.b16 %v860, %v858
        %v875 = vpack.c.b16 %v861, %v859
        %v876 = vpack.c.b16 %v864, %v862
        %v877 = vpack.c.b16 %v865, %v863
        %v878 = vpack.c.b16 %v868, %v866
        %v879 = vpack.c.b16 %v869, %v867
        %v880 = vpack.c.b16 %v872, %v870
        %v881 = vpack.c.b16 %v873, %v871
        %v891 = vsel %vm448, %v829, 0
        %893 = vmatprep.subr.bf16.mxu0 %v875
        %894 = vmatpush1.bf16.msra.mxu0 %v874
        %895 = vmatprep.subr.bf16.mxu0 %v877
        %896 = vmatpush1.bf16.msra.mxu0 %v876
        %897 = vmatprep.subr.bf16.mxu0 %v879
        %898 = vmatpush1.bf16.msra.mxu0 %v878
        %899 = vmatprep.subr.bf16.mxu0 %v881
        %900 = vmatpush1.bf16.msra.mxu0 %v880
        %901 = vmatprep.subr.bf16.mxu0 0
        %902 = vmatpush1.bf16.msra.mxu0 0
        %903 = vmatprep.subr.bf16.mxu0 0
        %904 = vmatpush1.bf16.msra.mxu0 0
        %905 = vmatprep.subr.bf16.mxu0 0
        %906 = vmatpush1.bf16.msra.mxu0 0
        %907 = vmatprep.subr.bf16.mxu0 0
        %908 = vmatpush1.bf16.msra.mxu0 0
        %909 = vmatprep.subr.bf16.mxu0 0
        %910 = vmatpush1.bf16.msra.mxu0 0
        %911 = vmatprep.subr.bf16.mxu0 0
        %912 = vmatpush1.bf16.msra.mxu0 0
        %913 = vmatprep.subr.bf16.mxu0 0
        %914 = vmatpush1.bf16.msra.mxu0 0
        %915 = vmatprep.subr.bf16.mxu0 0
        %916 = vmatpush1.bf16.msra.mxu0 0
        %917 = vmatprep.subr.bf16.mxu0 0
        %918 = vmatpush1.bf16.msra.mxu0 0
        %919 = vmatprep.subr.bf16.mxu0 0
        %920 = vmatpush1.bf16.msra.mxu0 0
        %921 = vmatprep.subr.bf16.mxu0 0
        %922 = vmatpush1.bf16.msra.mxu0 0
        %923 = vmatprep.subr.bf16.mxu0 0
        %924 = vmatpush1.bf16.msra.mxu0 0
        %925 = vmatprep.mubr.bf16.mxu0 0
        %926 = vmatmul.mubr.bf16.gmra.mrb[0].mxu0 %v891
        %v927 = vpop.f32.mrb[0].mxu0
        %v928 = vadd.f32 %v843, %v927
        %v929 = vpop.f32.mrb[0].mxu0
        %v930 = vadd.f32 %v847, %v929
        %v931 = vpop.f32.mrb[0].mxu0
        %v932 = vpop.f32.mrb[0].mxu0
        %933 = vdwg.mxu0
        %v934 = vmul.f32 %v928, 0.5
        %v935 = vmul.f32 %v930, 0.5
        %v936 = vmul.f32 %v928, 0.70710677
        %v937 = vmul.f32 %v930, 0.70710677
        %v938 = verf.f32.pop %v936
        %v939 = verf.f32.pop %v937
        %v940 = vadd.f32 %v938, 1.0
        %v941 = vadd.f32 %v939, 1.0
        %v942 = vmul.f32 %v934, %v940
        %v943 = vmul.f32 %v935, %v941
        %v944 = vpack.c.bf16 %v942, %v942
        %v945 = vpack.c.bf16 %v943, %v943
        %v946 = vld [vmem:[%s8] sm:$0xf]
        %v947 = vld [vmem:[%s8 + $0x4] sm:$0xf]
        %v948 = vld [vmem:[%s8 + $0x8] sm:$0xf]
        %v949 = vld [vmem:[%s8 + $0xc] sm:$0xf]
        %v950 = vld [vmem:[%s8 + $0x10] sm:$0xf]
        %v951 = vld [vmem:[%s8 + $0x14] sm:$0xf]
        %v952 = vld [vmem:[%s8 + $0x18] sm:$0xf]
        %v953 = vld [vmem:[%s8 + $0x1c] sm:$0xf]
        %v954 = vld [vmem:[%s8 + $0x20] sm:$0xf]
        %v955 = vld [vmem:[%s8 + $0x24] sm:$0xf]
        %v956 = vld [vmem:[%s8 + $0x28] sm:$0xf]
        %v957 = vld [vmem:[%s8 + $0x2c] sm:$0xf]
        %v958 = vld [vmem:[%s8 + $0x30] sm:$0xf]
        %v959 = vld [vmem:[%s8 + $0x34] sm:$0xf]
        %v960 = vld [vmem:[%s8 + $0x38] sm:$0xf]
        %v961 = vld [vmem:[%s8 + $0x3c] sm:$0xf]
        %v962 = vld [vmem:[%s8 + $0x40] sm:$0xf]
        %v963 = vld [vmem:[%s8 + $0x44] sm:$0xf]
        %v964 = vld [vmem:[%s8 + $0x48] sm:$0xf]
        %v965 = vld [vmem:[%s8 + $0x4c] sm:$0xf]
        %v966 = vld [vmem:[%s8 + $0x50] sm:$0xf]
        %v967 = vld [vmem:[%s8 + $0x54] sm:$0xf]
        %v968 = vld [vmem:[%s8 + $0x58] sm:$0xf]
        %v969 = vld [vmem:[%s8 + $0x5c] sm:$0xf]
        %v970 = vld [vmem:[%s8 + $0x60] sm:$0xf]
        %v971 = vld [vmem:[%s8 + $0x64] sm:$0xf]
        %v972 = vld [vmem:[%s8 + $0x68] sm:$0xf]
        %v973 = vld [vmem:[%s8 + $0x6c] sm:$0xf]
        %v974 = vld [vmem:[%s8 + $0x70] sm:$0xf]
        %v975 = vld [vmem:[%s8 + $0x74] sm:$0xf]
        %v976 = vld [vmem:[%s8 + $0x78] sm:$0xf]
        %v977 = vld [vmem:[%s8 + $0x7c] sm:$0xf]
        %v978 = vlaneseq
        %v979 = vshrl.u32 %v978, 7
        %v980 = vsub.s32 0, %v979
        %v981 = vrot.slane %v723, %v980
        %v1014 = vunpack.c.l.b16 %v946
        %v1015 = vunpack.c.l.b16 %v947
        %v1016 = vunpack.c.l.b16 %v948
        %v1017 = vunpack.c.l.b16 %v949
        %v1018 = vunpack.c.l.b16 %v950
        %v1019 = vunpack.c.l.b16 %v951
        %v1020 = vunpack.c.l.b16 %v952
        %v1021 = vunpack.c.l.b16 %v953
        %v1022 = vunpack.c.l.b16 %v954
        %v1023 = vunpack.c.l.b16 %v955
        %v1024 = vunpack.c.l.b16 %v956
        %v1025 = vunpack.c.l.b16 %v957
        %v1026 = vunpack.c.l.b16 %v958
        %v1027 = vunpack.c.l.b16 %v959
        %v1028 = vunpack.c.l.b16 %v960
        %v1029 = vunpack.c.l.b16 %v961
        %v1030 = vunpack.c.l.b16 %v962
        %v1031 = vunpack.c.l.b16 %v963
        %v1032 = vunpack.c.l.b16 %v964
        %v1033 = vunpack.c.l.b16 %v965
        %v1034 = vunpack.c.l.b16 %v966
        %v1035 = vunpack.c.l.b16 %v967
        %v1036 = vunpack.c.l.b16 %v968
        %v1037 = vunpack.c.l.b16 %v969
        %v1038 = vunpack.c.l.b16 %v970
        %v1039 = vunpack.c.l.b16 %v971
        %v1040 = vunpack.c.l.b16 %v972
        %v1041 = vunpack.c.l.b16 %v973
        %v1042 = vunpack.c.l.b16 %v974
        %v1043 = vunpack.c.l.b16 %v975
        %v1044 = vunpack.c.l.b16 %v976
        %v1045 = vunpack.c.l.b16 %v977
        %v1046 = vpack.c.b16 %v1015, %v1014
        %v1047 = vpack.c.b16 %v1017, %v1016
        %v1048 = vpack.c.b16 %v1019, %v1018
        %v1049 = vpack.c.b16 %v1021, %v1020
        %v1050 = vpack.c.b16 %v1023, %v1022
        %v1051 = vpack.c.b16 %v1025, %v1024
        %v1052 = vpack.c.b16 %v1027, %v1026
        %v1053 = vpack.c.b16 %v1029, %v1028
        %v1054 = vpack.c.b16 %v1031, %v1030
        %v1055 = vpack.c.b16 %v1033, %v1032
        %v1056 = vpack.c.b16 %v1035, %v1034
        %v1057 = vpack.c.b16 %v1037, %v1036
        %v1058 = vpack.c.b16 %v1039, %v1038
        %v1059 = vpack.c.b16 %v1041, %v1040
        %v1060 = vpack.c.b16 %v1043, %v1042
        %v1061 = vpack.c.b16 %v1045, %v1044
        %1078 = vmatprep.subr.bf16.mxu0 0
        %1079 = vmatpush1.bf16.msra.mxu0 %v1046
        %1080 = vmatprep.subr.bf16.mxu0 0
        %1081 = vmatpush1.bf16.msra.mxu0 %v1047
        %1082 = vmatprep.subr.bf16.mxu0 0
        %1083 = vmatpush1.bf16.msra.mxu0 %v1048
        %1084 = vmatprep.subr.bf16.mxu0 0
        %1085 = vmatpush1.bf16.msra.mxu0 %v1049
        %1086 = vmatprep.subr.bf16.mxu0 0
        %1087 = vmatpush1.bf16.msra.mxu0 %v1050
        %1088 = vmatprep.subr.bf16.mxu0 0
        %1089 = vmatpush1.bf16.msra.mxu0 %v1051
        %1090 = vmatprep.subr.bf16.mxu0 0
        %1091 = vmatpush1.bf16.msra.mxu0 %v1052
        %1092 = vmatprep.subr.bf16.mxu0 0
        %1093 = vmatpush1.bf16.msra.mxu0 %v1053
        %1094 = vmatprep.subr.bf16.mxu0 0
        %1095 = vmatpush1.bf16.msra.mxu0 %v1054
        %1096 = vmatprep.subr.bf16.mxu0 0
        %1097 = vmatpush1.bf16.msra.mxu0 %v1055
        %1098 = vmatprep.subr.bf16.mxu0 0
        %1099 = vmatpush1.bf16.msra.mxu0 %v1056
        %1100 = vmatprep.subr.bf16.mxu0 0
        %1101 = vmatpush1.bf16.msra.mxu0 %v1057
        %1102 = vmatprep.subr.bf16.mxu0 0
        %1103 = vmatpush1.bf16.msra.mxu0 %v1058
        %1104 = vmatprep.subr.bf16.mxu0 0
        %1105 = vmatpush1.bf16.msra.mxu0 %v1059
        %1106 = vmatprep.subr.bf16.mxu0 0
        %1107 = vmatpush1.bf16.msra.mxu0 %v1060
        %1108 = vmatprep.subr.bf16.mxu0 0
        %1109 = vmatpush1.bf16.msra.mxu0 %v1061
        %1110 = vmatprep.mubr.bf16.mxu0 %v945
        %1111 = vmatmul.mubr.bf16.gmra.mrb[0].mxu0 %v944
        %v1112 = vpop.f32.mrb[0].mxu0
        %v1113 = vadd.f32 %v981, %v1112
        %v1114 = vpop.f32.mrb[0].mxu0
        %v1115 = vpop.f32.mrb[0].mxu0
        %v1116 = vpop.f32.mrb[0].mxu0
        %1117 = vdwg.mxu0
        %1118 = vst.msk [vmem:[%s367] sm:$0xff] %vm448, %v1113
        %s1119 = sand.u32 %s235, 1
        %s1120 = scalar_lea.sflag [#allocation8], %s1119
        %s1121 = sand.u32 %s235, 1
        %s1122 = smul.addr %s1121, 8
        %s1123 = scalar_lea.vmem [#allocation7], %s1122
        %s1124 = sand.u32 %s261, 1
        %s1125 = scalar_lea.sflag [#allocation10], %s1124
        %s1126 = sand.u32 %s261, 1
        %s1127 = smul.addr %s1126, 16
        %s1128 = scalar_lea.vmem [#allocation9], %s1127
        // Predicated region
        $region64: #{tpu_custom_call.1} parent=55 // pred_check
          %p1129 = pneg %p245
        $region65: #{tpu_custom_call.1} parent=55 // pred_check_branch
          %1131 = sbr.rel (%p1129) target = $region67
        $region66: #{tpu_custom_call.1} parent=55 // pred_region
          %s1133 = ssub.s32 128, 128
          %1134 = vsyncadd %s1120, %s1133
          %s1135 = smul.addr %s28, 128
          %s1136 = scalar_lea.hbm %s9, %s1135
          %s1138 = sshll.u32 %s1123, 4
          %s1139 = int_to_ptr.vmem [resolvable:$true] %s1138
          %1141 = dma.vmem_to_hbm [thread:$0]  %s1139, 128, %s1136, %s1120
        $region67: #{tpu_custom_call.1} parent=55 // pred_fallthru
          _
        // Predicated region
        $region68: #{tpu_custom_call.1} parent=55 // pred_check
          %p1142 = pneg %p271
        $region69: #{tpu_custom_call.1} parent=55 // pred_check_branch
          %1144 = sbr.rel (%p1142) target = $region71
        $region70: #{tpu_custom_call.1} parent=55 // pred_region
          %s1146 = ssub.s32 256, 256
          %1147 = vsyncadd %s1125, %s1146
          %s1148 = smul.addr %s28, 4
          %s1149 = smul.addr %s1148, 64
          %s1150 = scalar_lea.hbm %s10, %s1149
          %s1151 = sshll.u32 %s1128, 4
          %s1152 = int_to_ptr.vmem [resolvable:$true] %s1151
          %1157 = dma.vmem_to_hbm [thread:$0]  %s1152, 256, %s1150, %s1125, 64, 64, 4
        $region71: #{tpu_custom_call.1} parent=55 // pred_fallthru
          _
      $region56: #{tpu_custom_call.1} parent=5 // pred_fallthru
        _
      %p1158 = scmp.le.s32.totalorder 2, %s23
      // Predicated region
      $region72: #{tpu_custom_call.1} parent=5 // pred_check
        %p1159 = pneg %p1158
      $region73: #{tpu_custom_call.1} parent=5 // pred_check_branch
        %1161 = sbr.rel (%p1159) target = $region75
      $region74: #{tpu_custom_call.1} parent=5 // pred_region
        %s1162 = ssub.s32 %s23, 2
        // Predicated region
        $region76: #{tpu_custom_call.1} parent=74 // pred_check
          %p1163 = pneg %p251
        $region77: #{tpu_custom_call.1} parent=74 // pred_check_branch
          %1165 = sbr.rel (%p1163) target = $region79
        $region78: #{tpu_custom_call.1} parent=74 // pred_region
          %s1166 = sand.u32 %s236, 1
          %s1167 = scalar_lea.sflag [#allocation8], %s1166
          %s1168 = sand.u32 %s236, 1
          %s1169 = smul.addr %s1168, 8
          %s1170 = scalar_lea.vmem [#allocation7], %s1169
          %1171 = dma.done %s1167, 128
        $region79: #{tpu_custom_call.1} parent=74 // pred_fallthru
          _
        // Predicated region
        $region80: #{tpu_custom_call.1} parent=74 // pred_check
          %p1172 = pneg %p277
        $region81: #{tpu_custom_call.1} parent=74 // pred_check_branch
          %1174 = sbr.rel (%p1172) target = $region83
        $region82: #{tpu_custom_call.1} parent=74 // pred_region
          %s1175 = sand.u32 %s262, 1
          %s1176 = scalar_lea.sflag [#allocation10], %s1175
          %s1177 = sand.u32 %s262, 1
          %s1178 = smul.addr %s1177, 16
          %s1179 = scalar_lea.vmem [#allocation9], %s1178
          %1180 = dma.done %s1176, 256
        $region83: #{tpu_custom_call.1} parent=74 // pred_fallthru
          _
      $region75: #{tpu_custom_call.1} parent=5 // pred_fallthru
        _
    $region6: #{tpu_custom_call.1} parent=1 // loop_footer
      %s27 = sadd.s32 1, %s23
    $region7: #{tpu_custom_call.1} parent=1 // loop_footer_branch
      %22 = sbr.rel target = $region3
    $region8: #{tpu_custom_call.1} parent=1 // loop_exit
      _
    %1181 = vsyncpa [#allocation8], 1
    %s1182 = scalar_lea.sflag [#allocation8], 1
    %1183 = vsyncpa %s1182, 1
    %1184 = vsyncpa [#allocation10], 1
    %s1185 = scalar_lea.sflag [#allocation10], 1
    %1186 = vsyncpa %s1185, 1

</llo_original>
